<compile_context>
chip_gen: v7x
topology: tpu7x:2x2x1
jax: 0.10.0
libtpu: 0.0.40
codegen_flags: <defaults>
</compile_context>

<pallas_src>
import functools

import jax
import jax.numpy as jnp
import numpy as np
from jax import lax
from jax.experimental import pallas as pl
from jax.experimental.pallas import tpu as pltpu


def _preact_block_kernel(x_ref, s1_ref, t1_ref, w1_ref, t2_ref, w2_ref, out_ref, *, H):
    # x_ref  : (M, W*Cin)                  M = B_TILE*H lane-dense flattened rows
    # s1/t1  : (1, W*Cin)                  folded BN1 scale / shift, tiled W times
    # w1_ref : (3*W*Cin, W*Cmid+W*Cout)    merged-K conv1 block-Toeplitz weight; BN2
    #                                      scale pre-folded into the first W*Cmid cols,
    #                                      shortcut in the last W*Cout cols (centre K rows)
    # t2_ref : (1, W*Cmid)                 folded BN2 shift, tiled W times
    # w2_ref : (3*W*Cmid, W*Cout)          merged-K conv2 block-Toeplitz weight
    # out_ref: (M, W*Cout)                 lane-dense bf16 output rows
    M, _ = x_ref.shape
    WCmid = t2_ref.shape[1]

    # Pre-activation: ReLU(BN1(x)) in f32 on the lane-dense layout.
    a = jnp.maximum(x_ref[...] * s1_ref[...] + t1_ref[...], 0.0)       # (M, W*Cin)

    # Per-image row position (rows are B_TILE images of H rows each, flattened).
    row = lax.broadcasted_iota(jnp.int32, (M, 1), 0)
    h = row % H
    not_first = h != 0          # input row h-1 exists inside this image
    not_last = h != (H - 1)     # input row h+1 exists inside this image

    def im2row(v):
        # dy=0 window: output row h reads input row h-1; dy=2 window: row h+1.
        # pltpu.roll wraps across image boundaries within the batch tile; the per-image
        # masks zero exactly those rows, which is the SAME zero padding in H.
        prev = jnp.where(not_first, pltpu.roll(v, 1, 0), 0.0)
        nxt = jnp.where(not_last, pltpu.roll(v, M - 1, 0), 0.0)
        # One f32 -> bf16 cast of the merged-K operand (single MXU matmul per conv).
        return jnp.concatenate([prev, v, nxt], axis=1).astype(jnp.bfloat16)

    # conv1 (3x3, SAME) + folded 1x1 shortcut: one (M, 3*WCin) @ (3*WCin, WCmid+WCout).
    acc1 = jnp.dot(im2row(a), w1_ref[...], preferred_element_type=jnp.float32)
    sc = acc1[:, WCmid:]                                                # shortcut branch
    # Dropout(p=0.25) is identity in eval mode; BN2 scale is folded -> shift + ReLU only.
    b = jnp.maximum(acc1[:, :WCmid] + t2_ref[...], 0.0)                 # (M, W*Cmid)

    # conv2 (3x3, SAME) fused with the residual add: one (M, 3*WCmid) @ (3*WCmid, WCout).
    acc2 = sc + jnp.dot(im2row(b), w2_ref[...], preferred_element_type=jnp.float32)
    out_ref[...] = acc2.astype(out_ref.dtype)                           # unmasked 128-lane store


def _conv3x3_im2row_weight(w, W):
    """(Cout, Cin, 3, 3) torch conv weight -> (3*W*Cin, W*Cout) merged-K block-Toeplitz.

    Rows [dy*W*Cin + (w_src*Cin + ci)], cols [w_dst*Cout + co] hold w[co, ci, dy, dx]
    with dx = w_dst - w_src + 1; zeros where w_src falls outside [0, W) (SAME padding
    in the W direction lives entirely in this zero structure).
    """
    Cout, Cin = w.shape[0], w.shape[1]
    slabs = []
    for dy in range(3):
        g = jnp.zeros((W * Cin, W * Cout), jnp.float32)
        for dx in range(3):
            sel = jnp.asarray(np.eye(W, k=1 - dx), jnp.float32)   # src col -> dst col
            g = g + jnp.kron(sel, jnp.transpose(w[:, :, dy, dx]))
        slabs.append(g)
    return jnp.concatenate(slabs, axis=0)


def _pick_batch_tile(N, H, target_rows=128):
    """Largest divisor of N with B_TILE*H <= target_rows; keep grid >= 2 when possible."""
    cand = [b for b in range(1, N + 1)
            if N % b == 0 and b * H <= target_rows and ((b * H) % 8 == 0 or b == N)]
    if not cand:
        return N
    b = max(cand)
    if b == N and N > 1:
        smaller = [c for c in cand if c < N]
        if smaller:
            b = max(smaller)       # >= 2 grid steps so v7x's two TensorCores both get work
    return b


def preact_block_rows(x_rows, params, *, H, W, eps=1e-5):
    """Fused PreActBlock on lane-dense rows. x_rows: (N*H, W*Cin) f32 -> (N*H, W*Cout) bf16."""
    NH, WCin = x_rows.shape
    Cin = WCin // W
    N = NH // H
    Cmid = params['conv1_w'].shape[0]
    Cout = params['conv2_w'].shape[0]

    # Fold inference BatchNorm into per-channel scale / shift, tiled to the flat-row layout.
    s1 = params['bn1_gamma'] / jnp.sqrt(params['bn1_var'] + eps)
    t1 = params['bn1_beta'] - params['bn1_mean'] * s1
    s2 = params['bn2_gamma'] / jnp.sqrt(params['bn2_var'] + eps)
    t2 = params['bn2_beta'] - params['bn2_mean'] * s2
    s1t = jnp.tile(s1, W).reshape(1, W * Cin).astype(jnp.float32)
    t1t = jnp.tile(t1, W).reshape(1, W * Cin).astype(jnp.float32)
    t2t = jnp.tile(t2, W).reshape(1, W * Cmid).astype(jnp.float32)

    # conv1 merged-K weight with BN2 scale folded into its columns (compile-time constant
    # transform) and the 1x1 shortcut appended as extra N columns, non-zero only on the
    # centre (dy=1) K block.
    g1 = _conv3x3_im2row_weight(params['conv1_w'], W)                  # (3*W*Cin, W*Cmid)
    g1 = g1 * jnp.tile(s2, W)[None, :]                                 # fold BN2 scale
    ws2d = jnp.transpose(params['short_w'][:, :, 0, 0])                # (Cin, Cout)
    gsc = jnp.kron(jnp.eye(W, dtype=jnp.float32), ws2d)                # (W*Cin, W*Cout)
    gsc_full = jnp.concatenate(
        [jnp.zeros_like(gsc), gsc, jnp.zeros_like(gsc)], axis=0)       # centre K rows only
    w1c = jnp.concatenate([g1, gsc_full], axis=1).astype(jnp.bfloat16) # (3*W*Cin, W*(Cmid+Cout))
    w2c = _conv3x3_im2row_weight(params['conv2_w'], W).astype(jnp.bfloat16)  # (3*W*Cmid, W*Cout)

    B_TILE = _pick_batch_tile(N, H)
    M = B_TILE * H

    return pl.pallas_call(
        functools.partial(_preact_block_kernel, H=H),
        out_shape=jax.ShapeDtypeStruct((NH, W * Cout), jnp.bfloat16),
        grid=(N // B_TILE,),
        in_specs=[
            pl.BlockSpec((M, W * Cin), lambda n: (n, 0)),                          # x rows
            pl.BlockSpec((1, W * Cin), lambda n: (0, 0)),                          # bn1 scale
            pl.BlockSpec((1, W * Cin), lambda n: (0, 0)),                          # bn1 shift
            pl.BlockSpec((3 * W * Cin, W * (Cmid + Cout)), lambda n: (0, 0)),      # conv1 + shortcut
            pl.BlockSpec((1, W * Cmid), lambda n: (0, 0)),                         # bn2 shift
            pl.BlockSpec((3 * W * Cmid, W * Cout), lambda n: (0, 0)),              # conv2
        ],
        out_specs=pl.BlockSpec((M, W * Cout), lambda n: (n, 0)),
        compiler_params=pltpu.CompilerParams(
            dimension_semantics=("parallel",),
            vmem_limit_bytes=64 * 1024 * 1024),
    )(x_rows, s1t, t1t, w1c, t2t, w2c)


@jax.jit
def preact_block_forward(x_nchw, params, eps=1e-5):
    """NCHW convenience wrapper (for parity with the torch block). x: (N,Cin,H,W)->(N,Cout,H,W).

    When chaining blocks, keep the lane-dense bf16 (N*H, W*C) output of preact_block_rows
    instead of round-tripping through NCHW / f32 after every block.
    """
    N, Cin, H, W = x_nchw.shape
    Cout = params['conv2_w'].shape[0]
    x_rows = jnp.transpose(x_nchw, (0, 2, 3, 1)).astype(jnp.float32).reshape(N * H, W * Cin)
    out_rows = preact_block_rows(x_rows, params, H=H, W=W, eps=eps)
    return jnp.transpose(out_rows.reshape(N, H, W, Cout), (0, 3, 1, 2)).astype(jnp.float32)


def reference_forward(x_nchw, params, eps=1e-5):
    """Pure-JAX reference (eval-mode PreActBlock) for verification."""
    x = jnp.transpose(x_nchw, (0, 2, 3, 1)).astype(jnp.float32)
    s1 = params['bn1_gamma'] / jnp.sqrt(params['bn1_var'] + eps)
    t1 = params['bn1_beta'] - params['bn1_mean'] * s1
    s2 = params['bn2_gamma'] / jnp.sqrt(params['bn2_var'] + eps)
    t2 = params['bn2_beta'] - params['bn2_mean'] * s2
    a = jnp.maximum(x * s1 + t1, 0.0)
    w1 = jnp.transpose(params['conv1_w'], (2, 3, 1, 0))
    w2 = jnp.transpose(params['conv2_w'], (2, 3, 1, 0))
    ws = jnp.transpose(params['short_w'], (2, 3, 1, 0))
    conv = functools.partial(lax.conv_general_dilated, window_strides=(1, 1),
                             dimension_numbers=('NHWC', 'HWIO', 'NHWC'),
                             precision=lax.Precision.HIGHEST)
    sc = conv(a, ws, padding='VALID')
    o1 = conv(a, w1, padding='SAME')
    b = jnp.maximum(o1 * s2 + t2, 0.0)
    o2 = conv(b, w2, padding='SAME')
    return jnp.transpose(o2 + sc, (0, 3, 1, 2))


if __name__ == "__main__":
    key = jax.random.PRNGKey(0)
    N, Cin, H, W = 16, 4, 16, 16   # N=16 -> B_TILE=8 (M=128 rows/matmul), grid of 2 steps
    planes = 8                      # in_planes != planes -> shortcut is a 1x1 conv (stride=1)

    ks = jax.random.split(key, 12)
    x = jax.random.normal(ks[0], (N, Cin, H, W), jnp.float32)
    params = {
        'bn1_gamma': jax.random.uniform(ks[1], (Cin,), jnp.float32, 0.5, 1.5),
        'bn1_beta':  0.1 * jax.random.normal(ks[2], (Cin,), jnp.float32),
        'bn1_mean':  0.1 * jax.random.normal(ks[3], (Cin,), jnp.float32),
        'bn1_var':   jax.random.uniform(ks[4], (Cin,), jnp.float32, 0.5, 1.5),
        'conv1_w':   0.2 * jax.random.normal(ks[5], (planes, Cin, 3, 3), jnp.float32),
        'bn2_gamma': jax.random.uniform(ks[6], (planes,), jnp.float32, 0.5, 1.5),
        'bn2_beta':  0.1 * jax.random.normal(ks[7], (planes,), jnp.float32),
        'bn2_mean':  0.1 * jax.random.normal(ks[8], (planes,), jnp.float32),
        'bn2_var':   jax.random.uniform(ks[9], (planes,), jnp.float32, 0.5, 1.5),
        'conv2_w':   0.2 * jax.random.normal(ks[10], (planes, planes, 3, 3), jnp.float32),
        'short_w':   0.2 * jax.random.normal(ks[11], (planes, Cin, 1, 1), jnp.float32),
    }

    out = preact_block_forward(x, params)
    out = jax.block_until_ready(out)

    ref = reference_forward(x, params)
    np.testing.assert_allclose(np.asarray(out), np.asarray(ref), rtol=5e-2, atol=5e-2)

    print("KERNEL_OK")
</pallas_src>

<mosaic_0001>
module attributes {stable_mosaic.version = 11 : i64} {
  func.func @_preact_block_kernel(%arg0: i32, %arg1: memref<128x64xf32, #tpu.memory_space<vmem>>, %arg2: memref<1x64xf32, #tpu.memory_space<vmem>>, %arg3: memref<1x64xf32, #tpu.memory_space<vmem>>, %arg4: memref<192x256xbf16, #tpu.memory_space<vmem>>, %arg5: memref<1x128xf32, #tpu.memory_space<vmem>>, %arg6: memref<384x128xbf16, #tpu.memory_space<vmem>>, %arg7: memref<128x128xbf16, #tpu.memory_space<vmem>>) attributes {dimension_semantics = [#tpu.dimension_semantics<parallel>], iteration_bounds = array<i64: 2>, scalar_prefetch = 0 : i64, scratch_operands = 0 : i64, tpu.core_type = #tpu.core_type<tc>, window_params = [{transform_indices = @transform_0, window_bounds = array<i64: 128, 64>}, {pipeline_mode = #tpu.pipeline_mode<synchronous>, transform_indices = @transform_1, window_bounds = array<i64: 1, 64>}, {pipeline_mode = #tpu.pipeline_mode<synchronous>, transform_indices = @transform_2, window_bounds = array<i64: 1, 64>}, {pipeline_mode = #tpu.pipeline_mode<synchronous>, transform_indices = @transform_3, window_bounds = array<i64: 192, 256>}, {pipeline_mode = #tpu.pipeline_mode<synchronous>, transform_indices = @transform_4, window_bounds = array<i64: 1, 128>}, {pipeline_mode = #tpu.pipeline_mode<synchronous>, transform_indices = @transform_5, window_bounds = array<i64: 384, 128>}, {transform_indices = @transform_6, window_bounds = array<i64: 128, 128>}]} {
    %c0 = arith.constant 0 : index
    %c0_0 = arith.constant 0 : index
    %0 = vector.load %arg1[%c0, %c0_0] : memref<128x64xf32, #tpu.memory_space<vmem>>, vector<128x64xf32>
    %c0_1 = arith.constant 0 : index
    %c0_2 = arith.constant 0 : index
    %1 = vector.load %arg2[%c0_1, %c0_2] : memref<1x64xf32, #tpu.memory_space<vmem>>, vector<1x64xf32>
    %2 = vector.broadcast %1 : vector<1x64xf32> to vector<128x64xf32>
    %3 = arith.mulf %0, %2 : vector<128x64xf32>
    %c0_3 = arith.constant 0 : index
    %c0_4 = arith.constant 0 : index
    %4 = vector.load %arg3[%c0_3, %c0_4] : memref<1x64xf32, #tpu.memory_space<vmem>>, vector<1x64xf32>
    %5 = vector.broadcast %4 : vector<1x64xf32> to vector<128x64xf32>
    %6 = arith.addf %3, %5 : vector<128x64xf32>
    %cst = arith.constant 0.000000e+00 : f32
    %7 = vector.broadcast %cst : f32 to vector<128x64xf32>
    %8 = arith.maximumf %6, %7 : vector<128x64xf32>
    %9 = tpu.iota {dimensions = array<i32: 0>} : vector<128x1xi32>
    %c16_i32 = arith.constant 16 : i32
    %c0_i32 = arith.constant 0 : i32
    %10 = arith.cmpi eq, %c16_i32, %c0_i32 : i32
    %c1_i32 = arith.constant 1 : i32
    %11 = arith.select %10, %c1_i32, %c16_i32 : i32
    %12 = vector.broadcast %11 : i32 to vector<128x1xi32>
    %13 = arith.remsi %9, %12 : vector<128x1xi32>
    %c0_i32_5 = arith.constant 0 : i32
    %14 = vector.broadcast %c0_i32_5 : i32 to vector<128x1xi32>
    %15 = arith.cmpi ne, %13, %14 : vector<128x1xi32>
    %c0_i32_6 = arith.constant 0 : i32
    %16 = vector.broadcast %c0_i32_6 : i32 to vector<128x1xi32>
    %17 = arith.cmpi slt, %13, %16 : vector<128x1xi32>
    %c0_i32_7 = arith.constant 0 : i32
    %18 = arith.cmpi slt, %11, %c0_i32_7 : i32
    %19 = vector.broadcast %18 : i1 to vector<128x1xi1>
    %20 = vector.broadcast %19 : vector<128x1xi1> to vector<128x1xi1>
    %21 = arith.xori %17, %20 : vector<128x1xi1>
    %22 = arith.andi %21, %15 : vector<128x1xi1>
    %23 = vector.broadcast %11 : i32 to vector<128x1xi32>
    %24 = arith.addi %13, %23 : vector<128x1xi32>
    %25 = arith.select %22, %24, %13 : vector<128x1xi1>, vector<128x1xi32>
    %c0_i32_8 = arith.constant 0 : i32
    %26 = vector.broadcast %c0_i32_8 : i32 to vector<128x1xi32>
    %27 = arith.cmpi ne, %25, %26 : vector<128x1xi32>
    %c15_i32 = arith.constant 15 : i32
    %28 = vector.broadcast %c15_i32 : i32 to vector<128x1xi32>
    %29 = arith.cmpi ne, %25, %28 : vector<128x1xi32>
    %c1_i32_9 = arith.constant 1 : i32
    %30 = tpu.dynamic_rotate %8 by %c1_i32_9 dim 0 : vector<128x64xf32>, i32 -> vector<128x64xf32>
    %cst_10 = arith.constant 0.000000e+00 : f32
    %31 = vector.shape_cast %27 : vector<128x1xi1> to vector<128x1xi1>
    %32 = vector.broadcast %31 : vector<128x1xi1> to vector<128x64xi1>
    %33 = vector.broadcast %cst_10 : f32 to vector<128x64xf32>
    %34 = arith.select %32, %30, %33 : vector<128x64xi1>, vector<128x64xf32>
    %c127_i32 = arith.constant 127 : i32
    %35 = tpu.dynamic_rotate %8 by %c127_i32 dim 0 : vector<128x64xf32>, i32 -> vector<128x64xf32>
    %cst_11 = arith.constant 0.000000e+00 : f32
    %36 = vector.shape_cast %29 : vector<128x1xi1> to vector<128x1xi1>
    %37 = vector.broadcast %36 : vector<128x1xi1> to vector<128x64xi1>
    %38 = vector.broadcast %cst_11 : f32 to vector<128x64xf32>
    %39 = arith.select %37, %35, %38 : vector<128x64xi1>, vector<128x64xf32>
    %40 = tpu.concatenate %34, %8, %39 in 1 : vector<128x64xf32>, vector<128x64xf32>, vector<128x64xf32> -> vector<128x192xf32>
    %41 = arith.truncf %40 : vector<128x192xf32> to vector<128x192xbf16>
    %c0_12 = arith.constant 0 : index
    %c0_13 = arith.constant 0 : index
    %42 = vector.load %arg4[%c0_12, %c0_13] : memref<192x256xbf16, #tpu.memory_space<vmem>>, vector<192x256xbf16>
    %cst_14 = arith.constant dense<0.000000e+00> : vector<128x256xf32>
    %43 = tpu.matmul %41, %42, %cst_14 {dimension_numbers = #tpu.dot_dimension_numbers<[1], [0], [0], [1], [0, 0, 1, 1], [], []>} : vector<128x192xbf16>, vector<192x256xbf16>, vector<128x256xf32> -> vector<128x256xf32>
    %44 = vector.extract_strided_slice %43 {offsets = [0, 128], sizes = [128, 128], strides = [1, 1]} : vector<128x256xf32> to vector<128x128xf32>
    %45 = vector.extract_strided_slice %43 {offsets = [0, 0], sizes = [128, 128], strides = [1, 1]} : vector<128x256xf32> to vector<128x128xf32>
    %c0_15 = arith.constant 0 : index
    %c0_16 = arith.constant 0 : index
    %46 = vector.load %arg5[%c0_15, %c0_16] : memref<1x128xf32, #tpu.memory_space<vmem>>, vector<1x128xf32>
    %47 = vector.broadcast %46 : vector<1x128xf32> to vector<128x128xf32>
    %48 = arith.addf %45, %47 : vector<128x128xf32>
    %cst_17 = arith.constant 0.000000e+00 : f32
    %49 = vector.broadcast %cst_17 : f32 to vector<128x128xf32>
    %50 = arith.maximumf %48, %49 : vector<128x128xf32>
    %c1_i32_18 = arith.constant 1 : i32
    %51 = tpu.dynamic_rotate %50 by %c1_i32_18 dim 0 : vector<128x128xf32>, i32 -> vector<128x128xf32>
    %cst_19 = arith.constant 0.000000e+00 : f32
    %52 = vector.shape_cast %27 : vector<128x1xi1> to vector<128x1xi1>
    %53 = vector.broadcast %52 : vector<128x1xi1> to vector<128x128xi1>
    %54 = vector.broadcast %cst_19 : f32 to vector<128x128xf32>
    %55 = arith.select %53, %51, %54 : vector<128x128xi1>, vector<128x128xf32>
    %c127_i32_20 = arith.constant 127 : i32
    %56 = tpu.dynamic_rotate %50 by %c127_i32_20 dim 0 : vector<128x128xf32>, i32 -> vector<128x128xf32>
    %cst_21 = arith.constant 0.000000e+00 : f32
    %57 = vector.shape_cast %29 : vector<128x1xi1> to vector<128x1xi1>
    %58 = vector.broadcast %57 : vector<128x1xi1> to vector<128x128xi1>
    %59 = vector.broadcast %cst_21 : f32 to vector<128x128xf32>
    %60 = arith.select %58, %56, %59 : vector<128x128xi1>, vector<128x128xf32>
    %61 = tpu.concatenate %55, %50, %60 in 1 : vector<128x128xf32>, vector<128x128xf32>, vector<128x128xf32> -> vector<128x384xf32>
    %62 = arith.truncf %61 : vector<128x384xf32> to vector<128x384xbf16>
    %c0_22 = arith.constant 0 : index
    %c0_23 = arith.constant 0 : index
    %63 = vector.load %arg6[%c0_22, %c0_23] : memref<384x128xbf16, #tpu.memory_space<vmem>>, vector<384x128xbf16>
    %cst_24 = arith.constant dense<0.000000e+00> : vector<128x128xf32>
    %64 = tpu.matmul %62, %63, %cst_24 {dimension_numbers = #tpu.dot_dimension_numbers<[1], [0], [0], [1], [0, 0, 1, 1], [], []>} : vector<128x384xbf16>, vector<384x128xbf16>, vector<128x128xf32> -> vector<128x128xf32>
    %65 = arith.addf %44, %64 : vector<128x128xf32>
    %66 = arith.truncf %65 : vector<128x128xf32> to vector<128x128xbf16>
    %c0_25 = arith.constant 0 : index
    %c0_26 = arith.constant 0 : index
    %67 = vector.load %arg7[%c0_25, %c0_26] : memref<128x128xbf16, #tpu.memory_space<vmem>>, vector<128x128xbf16>
    tpu.vector_store %arg7[%c0_25, %c0_26], %66 {strides = array<i32>} : memref<128x128xbf16, #tpu.memory_space<vmem>>, vector<128x128xbf16>,
    return
  }
  func.func @transform_0(%arg0: i32) -> (i32, i32) {
    %c0_i32 = arith.constant 0 : i32
    %c0_i32_0 = arith.constant 0 : i32
    return %arg0, %c0_i32 : i32, i32
  }
  func.func @transform_1(%arg0: i32) -> (i32, i32) {
    %c0_i32 = arith.constant 0 : i32
    %c0_i32_0 = arith.constant 0 : i32
    %c0_i32_1 = arith.constant 0 : i32
    return %c0_i32, %c0_i32_0 : i32, i32
  }
  func.func @transform_2(%arg0: i32) -> (i32, i32) {
    %c0_i32 = arith.constant 0 : i32
    %c0_i32_0 = arith.constant 0 : i32
    %c0_i32_1 = arith.constant 0 : i32
    return %c0_i32, %c0_i32_0 : i32, i32
  }
  func.func @transform_3(%arg0: i32) -> (i32, i32) {
    %c0_i32 = arith.constant 0 : i32
    %c0_i32_0 = arith.constant 0 : i32
    %c0_i32_1 = arith.constant 0 : i32
    return %c0_i32, %c0_i32_0 : i32, i32
  }
  func.func @transform_4(%arg0: i32) -> (i32, i32) {
    %c0_i32 = arith.constant 0 : i32
    %c0_i32_0 = arith.constant 0 : i32
    %c0_i32_1 = arith.constant 0 : i32
    return %c0_i32, %c0_i32_0 : i32, i32
  }
  func.func @transform_5(%arg0: i32) -> (i32, i32) {
    %c0_i32 = arith.constant 0 : i32
    %c0_i32_0 = arith.constant 0 : i32
    %c0_i32_1 = arith.constant 0 : i32
    return %c0_i32, %c0_i32_0 : i32, i32
  }
  func.func @transform_6(%arg0: i32) -> (i32, i32) {
    %c0_i32 = arith.constant 0 : i32
    %c0_i32_0 = arith.constant 0 : i32
    return %arg0, %c0_i32 : i32, i32
  }
}

</mosaic_0001>

<llo_original>
// kernel: tile.34
$region0: #{tile.34}
  %s0 = inlined_call_operand.vmem [shape: f32[16,8], index: 0, kind: input, shape index: {}]
  %s1 = inlined_call_operand.hbm [shape: f32[1,128], index: 1, kind: output, shape index: {}]
  $region1: #{tile.34} parent=0
    #allocation0 [shape = 'u8[512]{0}', space=vmem, size = 0x400, scoped, tag = 'operand span for operand 1']
    #allocation1 [shape = 's32[1]{0}', space=sflag, size = 0x4, scoped, tag = 'scoped memory for tile.34']
    #allocation2 [shape = 'u8[4096]{0}', space=vmem, size = 0x1000, scoped, tag = 'scoped mem for output reshape']
    %2 = vsyncpa [#allocation1], 0
    %v3 = vld [vmem:[%s0] sm:$0x1]
    %vm4 = vcmask 64512
    %5 = vst.msk [vmem:[#allocation2] sm:$0x1] %vm4, %v3
    %s6 = scalar_lea.vmem %s0, 15
    %v7 = vld [vmem:[%s6] sm:$0x1]
    %8 = vrot.lane.b32.xlu0 %v7, 120
    %v9 = vpop.permute.xlu0 %8
    %vm10 = vcmask 1048512
    %11 = vst.msk [vmem:[#allocation2] sm:$0x1] %vm10, %v9
    %s12 = scalar_lea.vmem %s0, 14
    %v13 = vld [vmem:[%s12] sm:$0x1]
    %14 = vrot.lane.b32.xlu0 %v13, 112
    %v15 = vpop.permute.xlu0 %14
    %vm16 = vcmask 982912
    %17 = vst.msk [vmem:[#allocation2] sm:$0x1] %vm16, %v15
    %s18 = scalar_lea.vmem %s0, 13
    %v19 = vld [vmem:[%s18] sm:$0x1]
    %20 = vrot.lane.b32.xlu0 %v19, 104
    %v21 = vpop.permute.xlu0 %20
    %vm22 = vcmask 917312
    %23 = vst.msk [vmem:[#allocation2] sm:$0x1] %vm22, %v21
    %s24 = scalar_lea.vmem %s0, 12
    %v25 = vld [vmem:[%s24] sm:$0x1]
    %26 = vrot.lane.b32.xlu0 %v25, 96
    %v27 = vpop.permute.xlu0 %26
    %vm28 = vcmask 851712
    %29 = vst.msk [vmem:[#allocation2] sm:$0x1] %vm28, %v27
    %s30 = scalar_lea.vmem %s0, 11
    %v31 = vld [vmem:[%s30] sm:$0x1]
    %32 = vrot.lane.b32.xlu0 %v31, 88
    %v33 = vpop.permute.xlu0 %32
    %vm34 = vcmask 786112
    %35 = vst.msk [vmem:[#allocation2] sm:$0x1] %vm34, %v33
    %s36 = scalar_lea.vmem %s0, 10
    %v37 = vld [vmem:[%s36] sm:$0x1]
    %38 = vrot.lane.b32.xlu0 %v37, 80
    %v39 = vpop.permute.xlu0 %38
    %vm40 = vcmask 720512
    %41 = vst.msk [vmem:[#allocation2] sm:$0x1] %vm40, %v39
    %s42 = scalar_lea.vmem %s0, 9
    %v43 = vld [vmem:[%s42] sm:$0x1]
    %44 = vrot.lane.b32.xlu0 %v43, 72
    %v45 = vpop.permute.xlu0 %44
    %vm46 = vcmask 654912
    %47 = vst.msk [vmem:[#allocation2] sm:$0x1] %vm46, %v45
    %s48 = scalar_lea.vmem %s0, 8
    %v49 = vld [vmem:[%s48] sm:$0x1]
    %50 = vrot.lane.b32.xlu0 %v49, 64
    %v51 = vpop.permute.xlu0 %50
    %vm52 = vcmask 589312
    %53 = vst.msk [vmem:[#allocation2] sm:$0x1] %vm52, %v51
    %s54 = scalar_lea.vmem %s0, 7
    %v55 = vld [vmem:[%s54] sm:$0x1]
    %56 = vrot.lane.b32.xlu0 %v55, 56
    %v57 = vpop.permute.xlu0 %56
    %vm58 = vcmask 523712
    %59 = vst.msk [vmem:[#allocation2] sm:$0x1] %vm58, %v57
    %s60 = scalar_lea.vmem %s0, 6
    %v61 = vld [vmem:[%s60] sm:$0x1]
    %62 = vrot.lane.b32.xlu0 %v61, 48
    %v63 = vpop.permute.xlu0 %62
    %vm64 = vcmask 458112
    %65 = vst.msk [vmem:[#allocation2] sm:$0x1] %vm64, %v63
    %s66 = scalar_lea.vmem %s0, 5
    %v67 = vld [vmem:[%s66] sm:$0x1]
    %68 = vrot.lane.b32.xlu0 %v67, 40
    %v69 = vpop.permute.xlu0 %68
    %vm70 = vcmask 392512
    %71 = vst.msk [vmem:[#allocation2] sm:$0x1] %vm70, %v69
    %s72 = scalar_lea.vmem %s0, 4
    %v73 = vld [vmem:[%s72] sm:$0x1]
    %74 = vrot.lane.b32.xlu0 %v73, 32
    %v75 = vpop.permute.xlu0 %74
    %vm76 = vcmask 326912
    %77 = vst.msk [vmem:[#allocation2] sm:$0x1] %vm76, %v75
    %s78 = scalar_lea.vmem %s0, 3
    %v79 = vld [vmem:[%s78] sm:$0x1]
    %80 = vrot.lane.b32.xlu0 %v79, 24
    %v81 = vpop.permute.xlu0 %80
    %vm82 = vcmask 261312
    %83 = vst.msk [vmem:[#allocation2] sm:$0x1] %vm82, %v81
    %s84 = scalar_lea.vmem %s0, 2
    %v85 = vld [vmem:[%s84] sm:$0x1]
    %86 = vrot.lane.b32.xlu0 %v85, 16
    %v87 = vpop.permute.xlu0 %86
    %vm88 = vcmask 195712
    %89 = vst.msk [vmem:[#allocation2] sm:$0x1] %vm88, %v87
    %s90 = scalar_lea.vmem %s0, 1
    %v91 = vld [vmem:[%s90] sm:$0x1]
    %92 = vrot.lane.b32.xlu0 %v91, 8
    %v93 = vpop.permute.xlu0 %92
    %vm94 = vcmask 130112
    %95 = vst.msk [vmem:[#allocation2] sm:$0x1] %vm94, %v93
    %s97 = sshllo.u32 0, 1
    %v99 = vld [vmem:[#allocation2] sm:%s97]
    %s100 = sshllo.u32 0, 1
    %101 = vst [vmem:[#allocation0] sm:%s100] %v99
    %s103 = ssub.s32 16, 16
    %104 = vsyncadd [#allocation1], %s103
    %s106 = sshll.u32 [#allocation0], 4
    %s107 = int_to_ptr.vmem [resolvable:$true] %s106
    %109 = dma.vmem_to_hbm [thread:$0]  %s107, 16, %s1, [#allocation1]
    %110 = dma.done [#allocation1], 16
    %111 = vsyncpa [#allocation1], 1

// kernel: tile.33
$region0: #{tile.33}
  #allocation0 [shape = 's32[1]{0}', space=sflag, size = 0x4, scoped, tag = 'scoped memory for tile.33']
  %s0 = inlined_call_operand.vmem [shape: f32[8], index: 0, kind: input, shape index: {}]
  %s1 = inlined_call_operand.vmem [shape: f32[16,8], index: 1, kind: output, shape index: {}]
  // Predicated region
  $region2: #{tile.33} parent=0 // pred_check
    _
  $region3: #{tile.33} parent=0 // pred_check_branch
    %3 = sbr.rel (0) target = $region5
  $region4: #{tile.33} parent=0 // pred_region
    _
  $region5: #{tile.33} parent=0 // pred_fallthru
    _
  %v4 = vld [vmem:[%s0] ss:$0 sm:$0xff]
  %5 = vst [vmem:[%s1] sm:$0xff] %v4
  %s6 = scalar_lea.vmem %s1, 8
  %7 = vst [vmem:[%s6] sm:$0xff] %v4

// kernel: tile.28
$region0: #{tile.28}
  #allocation0 [shape = 's32[1]{0}', space=sflag, size = 0x4, scoped, tag = 'scoped memory for tile.28']
  %s0 = inlined_call_operand.vmem [shape: f32[4], index: 0, kind: input, shape index: {}]
  %s1 = inlined_call_operand.vmem [shape: f32[16,4], index: 1, kind: output, shape index: {}]
  // Predicated region
  $region2: #{tile.28} parent=0 // pred_check
    _
  $region3: #{tile.28} parent=0 // pred_check_branch
    %3 = sbr.rel (0) target = $region5
  $region4: #{tile.28} parent=0 // pred_region
    _
  $region5: #{tile.28} parent=0 // pred_fallthru
    _
  %v4 = vld [vmem:[%s0] ss:$0 sm:$0xff]
  %5 = vst [vmem:[%s1] sm:$0xff] %v4
  %s6 = scalar_lea.vmem %s1, 8
  %7 = vst [vmem:[%s6] sm:$0xff] %v4

// kernel: mul.37
$region0: #{mul.37}
  %s0 = inlined_call_operand.vmem [shape: f32[16,8], index: 0, kind: input, shape index: {}]
  %s1 = inlined_call_operand.vmem [shape: f32[128], index: 1, kind: output, shape index: {}]
  $region1: #{mul.37} parent=0
    #allocation0 [shape = 'u8[4096]{0}', space=vmem, size = 0x1000, scoped, tag = 'scoped mem for output reshape']
    %v2 = vld [vmem:[%s0] sm:$0x1]
    %vm3 = vcmask 64512
    %4 = vst.msk [vmem:[#allocation0] sm:$0x1] %vm3, %v2
    %s5 = scalar_lea.vmem %s0, 15
    %v6 = vld [vmem:[%s5] sm:$0x1]
    %7 = vrot.lane.b32.xlu0 %v6, 120
    %v8 = vpop.permute.xlu0 %7
    %vm9 = vcmask 1048512
    %10 = vst.msk [vmem:[#allocation0] sm:$0x1] %vm9, %v8
    %s11 = scalar_lea.vmem %s0, 14
    %v12 = vld [vmem:[%s11] sm:$0x1]
    %13 = vrot.lane.b32.xlu0 %v12, 112
    %v14 = vpop.permute.xlu0 %13
    %vm15 = vcmask 982912
    %16 = vst.msk [vmem:[#allocation0] sm:$0x1] %vm15, %v14
    %s17 = scalar_lea.vmem %s0, 13
    %v18 = vld [vmem:[%s17] sm:$0x1]
    %19 = vrot.lane.b32.xlu0 %v18, 104
    %v20 = vpop.permute.xlu0 %19
    %vm21 = vcmask 917312
    %22 = vst.msk [vmem:[#allocation0] sm:$0x1] %vm21, %v20
    %s23 = scalar_lea.vmem %s0, 12
    %v24 = vld [vmem:[%s23] sm:$0x1]
    %25 = vrot.lane.b32.xlu0 %v24, 96
    %v26 = vpop.permute.xlu0 %25
    %vm27 = vcmask 851712
    %28 = vst.msk [vmem:[#allocation0] sm:$0x1] %vm27, %v26
    %s29 = scalar_lea.vmem %s0, 11
    %v30 = vld [vmem:[%s29] sm:$0x1]
    %31 = vrot.lane.b32.xlu0 %v30, 88
    %v32 = vpop.permute.xlu0 %31
    %vm33 = vcmask 786112
    %34 = vst.msk [vmem:[#allocation0] sm:$0x1] %vm33, %v32
    %s35 = scalar_lea.vmem %s0, 10
    %v36 = vld [vmem:[%s35] sm:$0x1]
    %37 = vrot.lane.b32.xlu0 %v36, 80
    %v38 = vpop.permute.xlu0 %37
    %vm39 = vcmask 720512
    %40 = vst.msk [vmem:[#allocation0] sm:$0x1] %vm39, %v38
    %s41 = scalar_lea.vmem %s0, 9
    %v42 = vld [vmem:[%s41] sm:$0x1]
    %43 = vrot.lane.b32.xlu0 %v42, 72
    %v44 = vpop.permute.xlu0 %43
    %vm45 = vcmask 654912
    %46 = vst.msk [vmem:[#allocation0] sm:$0x1] %vm45, %v44
    %s47 = scalar_lea.vmem %s0, 8
    %v48 = vld [vmem:[%s47] sm:$0x1]
    %49 = vrot.lane.b32.xlu0 %v48, 64
    %v50 = vpop.permute.xlu0 %49
    %vm51 = vcmask 589312
    %52 = vst.msk [vmem:[#allocation0] sm:$0x1] %vm51, %v50
    %s53 = scalar_lea.vmem %s0, 7
    %v54 = vld [vmem:[%s53] sm:$0x1]
    %55 = vrot.lane.b32.xlu0 %v54, 56
    %v56 = vpop.permute.xlu0 %55
    %vm57 = vcmask 523712
    %58 = vst.msk [vmem:[#allocation0] sm:$0x1] %vm57, %v56
    %s59 = scalar_lea.vmem %s0, 6
    %v60 = vld [vmem:[%s59] sm:$0x1]
    %61 = vrot.lane.b32.xlu0 %v60, 48
    %v62 = vpop.permute.xlu0 %61
    %vm63 = vcmask 458112
    %64 = vst.msk [vmem:[#allocation0] sm:$0x1] %vm63, %v62
    %s65 = scalar_lea.vmem %s0, 5
    %v66 = vld [vmem:[%s65] sm:$0x1]
    %67 = vrot.lane.b32.xlu0 %v66, 40
    %v68 = vpop.permute.xlu0 %67
    %vm69 = vcmask 392512
    %70 = vst.msk [vmem:[#allocation0] sm:$0x1] %vm69, %v68
    %s71 = scalar_lea.vmem %s0, 4
    %v72 = vld [vmem:[%s71] sm:$0x1]
    %73 = vrot.lane.b32.xlu0 %v72, 32
    %v74 = vpop.permute.xlu0 %73
    %vm75 = vcmask 326912
    %76 = vst.msk [vmem:[#allocation0] sm:$0x1] %vm75, %v74
    %s77 = scalar_lea.vmem %s0, 3
    %v78 = vld [vmem:[%s77] sm:$0x1]
    %79 = vrot.lane.b32.xlu0 %v78, 24
    %v80 = vpop.permute.xlu0 %79
    %vm81 = vcmask 261312
    %82 = vst.msk [vmem:[#allocation0] sm:$0x1] %vm81, %v80
    %s83 = scalar_lea.vmem %s0, 2
    %v84 = vld [vmem:[%s83] sm:$0x1]
    %85 = vrot.lane.b32.xlu0 %v84, 16
    %v86 = vpop.permute.xlu0 %85
    %vm87 = vcmask 195712
    %88 = vst.msk [vmem:[#allocation0] sm:$0x1] %vm87, %v86
    %s89 = scalar_lea.vmem %s0, 1
    %v90 = vld [vmem:[%s89] sm:$0x1]
    %91 = vrot.lane.b32.xlu0 %v90, 8
    %v92 = vpop.permute.xlu0 %91
    %vm93 = vcmask 130112
    %94 = vst.msk [vmem:[#allocation0] sm:$0x1] %vm93, %v92
    %s96 = sshllo.u32 0, 1
    %v98 = vld [vmem:[#allocation0] sm:%s96]
    %s99 = sshllo.u32 0, 1
    %100 = vst [vmem:[%s1] sm:%s99] %v98

// kernel: tile.29
$region0: #{tile.29}
  %s0 = inlined_call_operand.vmem [shape: f32[16,4], index: 0, kind: input, shape index: {}]
  %s1 = inlined_call_operand.hbm [shape: f32[1,64], index: 1, kind: output, shape index: {}]
  $region1: #{tile.29} parent=0
    #allocation0 [shape = 'u8[512]{0}', space=vmem, size = 0x400, scoped, tag = 'operand span for operand 1']
    #allocation1 [shape = 's32[1]{0}', space=sflag, size = 0x4, scoped, tag = 'scoped memory for tile.29']
    #allocation2 [shape = 'u8[4096]{0}', space=vmem, size = 0x1000, scoped, tag = 'scoped mem for output reshape']
    %2 = vsyncpa [#allocation1], 0
    %v3 = vld [vmem:[%s0] sm:$0x1]
    %vm4 = vcmask 31744
    %5 = vst.msk [vmem:[#allocation2] sm:$0x1] %vm4, %v3
    %s6 = scalar_lea.vmem %s0, 15
    %v7 = vld [vmem:[%s6] sm:$0x1]
    %8 = vrot.lane.b32.xlu0 %v7, 60
    %v9 = vpop.permute.xlu0 %8
    %vm10 = vcmask 523744
    %11 = vst.msk [vmem:[#allocation2] sm:$0x1] %vm10, %v9
    %s12 = scalar_lea.vmem %s0, 14
    %v13 = vld [vmem:[%s12] sm:$0x1]
    %14 = vrot.lane.b32.xlu0 %v13, 56
    %v15 = vpop.permute.xlu0 %14
    %vm16 = vcmask 490944
    %17 = vst.msk [vmem:[#allocation2] sm:$0x1] %vm16, %v15
    %s18 = scalar_lea.vmem %s0, 13
    %v19 = vld [vmem:[%s18] sm:$0x1]
    %20 = vrot.lane.b32.xlu0 %v19, 52
    %v21 = vpop.permute.xlu0 %20
    %vm22 = vcmask 458144
    %23 = vst.msk [vmem:[#allocation2] sm:$0x1] %vm22, %v21
    %s24 = scalar_lea.vmem %s0, 12
    %v25 = vld [vmem:[%s24] sm:$0x1]
    %26 = vrot.lane.b32.xlu0 %v25, 48
    %v27 = vpop.permute.xlu0 %26
    %vm28 = vcmask 425344
    %29 = vst.msk [vmem:[#allocation2] sm:$0x1] %vm28, %v27
    %s30 = scalar_lea.vmem %s0, 11
    %v31 = vld [vmem:[%s30] sm:$0x1]
    %32 = vrot.lane.b32.xlu0 %v31, 44
    %v33 = vpop.permute.xlu0 %32
    %vm34 = vcmask 392544
    %35 = vst.msk [vmem:[#allocation2] sm:$0x1] %vm34, %v33
    %s36 = scalar_lea.vmem %s0, 10
    %v37 = vld [vmem:[%s36] sm:$0x1]
    %38 = vrot.lane.b32.xlu0 %v37, 40
    %v39 = vpop.permute.xlu0 %38
    %vm40 = vcmask 359744
    %41 = vst.msk [vmem:[#allocation2] sm:$0x1] %vm40, %v39
    %s42 = scalar_lea.vmem %s0, 9
    %v43 = vld [vmem:[%s42] sm:$0x1]
    %44 = vrot.lane.b32.xlu0 %v43, 36
    %v45 = vpop.permute.xlu0 %44
    %vm46 = vcmask 326944
    %47 = vst.msk [vmem:[#allocation2] sm:$0x1] %vm46, %v45
    %s48 = scalar_lea.vmem %s0, 8
    %v49 = vld [vmem:[%s48] sm:$0x1]
    %50 = vrot.lane.b32.xlu0 %v49, 32
    %v51 = vpop.permute.xlu0 %50
    %vm52 = vcmask 294144
    %53 = vst.msk [vmem:[#allocation2] sm:$0x1] %vm52, %v51
    %s54 = scalar_lea.vmem %s0, 7
    %v55 = vld [vmem:[%s54] sm:$0x1]
    %56 = vrot.lane.b32.xlu0 %v55, 28
    %v57 = vpop.permute.xlu0 %56
    %vm58 = vcmask 261344
    %59 = vst.msk [vmem:[#allocation2] sm:$0x1] %vm58, %v57
    %s60 = scalar_lea.vmem %s0, 6
    %v61 = vld [vmem:[%s60] sm:$0x1]
    %62 = vrot.lane.b32.xlu0 %v61, 24
    %v63 = vpop.permute.xlu0 %62
    %vm64 = vcmask 228544
    %65 = vst.msk [vmem:[#allocation2] sm:$0x1] %vm64, %v63
    %s66 = scalar_lea.vmem %s0, 5
    %v67 = vld [vmem:[%s66] sm:$0x1]
    %68 = vrot.lane.b32.xlu0 %v67, 20
    %v69 = vpop.permute.xlu0 %68
    %vm70 = vcmask 195744
    %71 = vst.msk [vmem:[#allocation2] sm:$0x1] %vm70, %v69
    %s72 = scalar_lea.vmem %s0, 4
    %v73 = vld [vmem:[%s72] sm:$0x1]
    %74 = vrot.lane.b32.xlu0 %v73, 16
    %v75 = vpop.permute.xlu0 %74
    %vm76 = vcmask 162944
    %77 = vst.msk [vmem:[#allocation2] sm:$0x1] %vm76, %v75
    %s78 = scalar_lea.vmem %s0, 3
    %v79 = vld [vmem:[%s78] sm:$0x1]
    %80 = vrot.lane.b32.xlu0 %v79, 12
    %v81 = vpop.permute.xlu0 %80
    %vm82 = vcmask 130144
    %83 = vst.msk [vmem:[#allocation2] sm:$0x1] %vm82, %v81
    %s84 = scalar_lea.vmem %s0, 2
    %v85 = vld [vmem:[%s84] sm:$0x1]
    %86 = vrot.lane.b32.xlu0 %v85, 8
    %v87 = vpop.permute.xlu0 %86
    %vm88 = vcmask 97344
    %89 = vst.msk [vmem:[#allocation2] sm:$0x1] %vm88, %v87
    %s90 = scalar_lea.vmem %s0, 1
    %v91 = vld [vmem:[%s90] sm:$0x1]
    %92 = vrot.lane.b32.xlu0 %v91, 4
    %v93 = vpop.permute.xlu0 %92
    %vm94 = vcmask 64544
    %95 = vst.msk [vmem:[#allocation2] sm:$0x1] %vm94, %v93
    %s97 = sshllo.u32 0, 1
    %v99 = vld [vmem:[#allocation2] sm:%s97]
    %s100 = sshllo.u32 0, 1
    %101 = vst [vmem:[#allocation0] sm:%s100] %v99
    %s103 = ssub.s32 16, 16
    %104 = vsyncadd [#allocation1], %s103
    %s106 = sshll.u32 [#allocation0], 4
    %s107 = int_to_ptr.vmem [resolvable:$true] %s106
    %109 = dma.vmem_to_hbm [thread:$0]  %s107, 16, %s1, [#allocation1]
    %110 = dma.done [#allocation1], 16
    %111 = vsyncpa [#allocation1], 1

// kernel: preact_block_forward.1
$region0: #{preact_block_forward.1}
  #allocation0 [shape = 'u32[]', space=smem, size = 0x4, offset = 0x4, fixed_abs, tag = 'smem constant byte address 0x4 - core index']
  #allocation1 [shape = 'u32[144,128]{1,0:T(1,128)}', space=vmem, size = 0x12000, scoped, tag = 'internal scratch']
  %s0 = inlined_call_operand.hbm [shape: f32[256,64], index: 0, kind: input, shape index: {}]
  %s1 = inlined_call_operand.hbm [shape: f32[1,64], index: 1, kind: input, shape index: {}]
  %s2 = inlined_call_operand.hbm [shape: f32[1,64], index: 2, kind: input, shape index: {}]
  %s3 = inlined_call_operand.hbm [shape: bf16[192,256], index: 3, kind: input, shape index: {}]
  %s4 = inlined_call_operand.hbm [shape: f32[1,128], index: 4, kind: input, shape index: {}]
  %s5 = inlined_call_operand.hbm [shape: bf16[384,128], index: 5, kind: input, shape index: {}]
  %s6 = inlined_call_operand.hbm [shape: bf16[256,128], index: 6, kind: output, shape index: {}]
  %s7 = sld [smem:[#allocation0]]
  $region81: #{preact_block_forward.1} parent=0
    _
  %s9 = ssub.s32 1, %s7
  %s10 = scalar_select 0, %s9, %s7
  $region1: #{preact_block_forward.1} parent=0
    #allocation2 [shape = 'u8[131072]{0}', space=vmem, size = 0x20000, scoped, tag = 'input window, operand 0']
    #allocation3 [shape = 's32[2]{0}', space=sflag, size = 0x8, scoped, tag = 'scoped memory for preact_block_forward.1']
    #allocation4 [shape = 's32[2]{0}', space=sflag, size = 0x8, scoped, tag = 'scoped memory for preact_block_forward.1']
    #allocation5 [shape = 'u8[512]{0}', space=vmem, size = 0x400, scoped, tag = 'input window, operand 1, single buffered']
    #allocation6 [shape = 's32[1]{0}', space=sflag, size = 0x4, scoped, tag = 'scoped memory for preact_block_forward.1']
    #allocation7 [shape = 'u8[512]{0}', space=vmem, size = 0x400, scoped, tag = 'input window, operand 2, single buffered']
    #allocation8 [shape = 'u8[98304]{0}', space=vmem, size = 0x18000, scoped, tag = 'input window, operand 3, single buffered']
    #allocation9 [shape = 's32[1]{0}', space=sflag, size = 0x4, scoped, tag = 'scoped memory for preact_block_forward.1']
    #allocation10 [shape = 'u8[512]{0}', space=vmem, size = 0x400, scoped, tag = 'input window, operand 4, single buffered']
    #allocation11 [shape = 'u8[98304]{0}', space=vmem, size = 0x18000, scoped, tag = 'input window, operand 5, single buffered']
    #allocation12 [shape = 's32[1]{0}', space=sflag, size = 0x4, scoped, tag = 'scoped memory for preact_block_forward.1']
    #allocation13 [shape = 'u8[65536]{0}', space=vmem, size = 0x10000, scoped, tag = 'output window, operand 0']
    %11 = vsyncpa [#allocation3], 0
    %s12 = scalar_lea.sflag [#allocation3], 1
    %13 = vsyncpa %s12, 0
    %14 = vsyncpa [#allocation6], 0
    %15 = vsyncpa [#allocation9], 0
    %16 = vsyncpa [#allocation12], 0
    %17 = vsyncpa [#allocation4], 0
    %s18 = scalar_lea.sflag [#allocation4], 1
    %19 = vsyncpa %s18, 0
    loop: start=0, step=1, limit=4
    $region2: #{preact_block_forward.1} parent=1 // loop_pre_header
      _
    $region3: #{preact_block_forward.1} parent=1 // loop_header
      %s21 = sphi 0, %s25
      %p22 = scmp.ge.s32.totalorder %s21, 4
      %s31 = sphi 0, %s33
      %s34 = sphi 0, %s31
      %s35 = sphi 0, %s34
      %s51 = sphi 0, %s35
      %s55 = sphi 0, %s55
      %s57 = sphi 0, %s55
      %s58 = sphi 0, %s57
      %s72 = sphi 0, %s58
      %s76 = sphi 0, %s76
      %s78 = sphi 0, %s76
      %s79 = sphi 0, %s78
      %s93 = sphi 0, %s79
      %s97 = sphi 0, %s97
      %s99 = sphi 0, %s97
      %s100 = sphi 0, %s99
      %s114 = sphi 0, %s100
      %s118 = sphi 0, %s118
      %s120 = sphi 0, %s118
      %s121 = sphi 0, %s120
      %s135 = sphi 0, %s121
      %s139 = sphi 0, %s139
      %s141 = sphi 0, %s139
      %s142 = sphi 0, %s141
      %s156 = sphi 0, %s142
      %s162 = sphi 0, %s164
      %s165 = sphi 0, %s162
      %s166 = sphi 0, %s165
      %s182 = sphi 0, %s166
    $region4: #{preact_block_forward.1} parent=1 // loop_header_branch
      %24 = sbr.rel (%p22) target = $region8
    $region5: #{preact_block_forward.1} parent=1 // loop_body
      %s26 = ssub.s32 %s21, 1
      %s27 = ssub.s32 %s21, 2
      %s28 = sadd.s32 %s21, 1
      %s29 = ssub.s32 %s21, %s28
      %p30 = scmp.eq.s32.totalorder %s29, 0
      %s32 = sadd.s32 %s31, 1
      %s33 = scalar_select %p30, %s31, %s32
      %p36 = pneg %p30
      %p37 = scmp.eq.s32.totalorder %s21, 1
      %p38 = por %p36, %p37
      %p39 = scmp.ne.s32.totalorder %s31, %s34
      %p40 = scmp.eq.s32.totalorder %s21, 0
      %p41 = por %p39, %p40
      %p42 = scmp.ne.s32.totalorder %s31, %s34
      %p43 = scmp.eq.s32.totalorder %s26, 1
      %p44 = por %p42, %p43
      %p45 = scmp.ne.s32.totalorder %s34, %s35
      %p46 = scmp.eq.s32.totalorder %s26, 0
      %p47 = por %p45, %p46
      %p48 = scmp.ne.s32.totalorder %s34, %s35
      %p49 = scmp.eq.s32.totalorder %s27, 1
      %p50 = por %p48, %p49
      %p52 = scmp.ne.s32.totalorder %s35, %s51
      %p53 = scmp.eq.s32.totalorder %s27, 0
      %p54 = por %p52, %p53
      %s56 = sadd.s32 %s55, 1
      %p59 = scmp.eq.s32.totalorder %s21, 1
      %p60 = scmp.ne.s32.totalorder %s55, %s57
      %p61 = scmp.eq.s32.totalorder %s21, 0
      %p62 = por %p60, %p61
      %p63 = scmp.ne.s32.totalorder %s55, %s57
      %p64 = scmp.eq.s32.totalorder %s26, 1
      %p65 = por %p63, %p64
      %p66 = scmp.ne.s32.totalorder %s57, %s58
      %p67 = scmp.eq.s32.totalorder %s26, 0
      %p68 = por %p66, %p67
      %p69 = scmp.ne.s32.totalorder %s57, %s58
      %p70 = scmp.eq.s32.totalorder %s27, 1
      %p71 = por %p69, %p70
      %p73 = scmp.ne.s32.totalorder %s58, %s72
      %p74 = scmp.eq.s32.totalorder %s27, 0
      %p75 = por %p73, %p74
      %s77 = sadd.s32 %s76, 1
      %p80 = scmp.eq.s32.totalorder %s21, 1
      %p81 = scmp.ne.s32.totalorder %s76, %s78
      %p82 = scmp.eq.s32.totalorder %s21, 0
      %p83 = por %p81, %p82
      %p84 = scmp.ne.s32.totalorder %s76, %s78
      %p85 = scmp.eq.s32.totalorder %s26, 1
      %p86 = por %p84, %p85
      %p87 = scmp.ne.s32.totalorder %s78, %s79
      %p88 = scmp.eq.s32.totalorder %s26, 0
      %p89 = por %p87, %p88
      %p90 = scmp.ne.s32.totalorder %s78, %s79
      %p91 = scmp.eq.s32.totalorder %s27, 1
      %p92 = por %p90, %p91
      %p94 = scmp.ne.s32.totalorder %s79, %s93
      %p95 = scmp.eq.s32.totalorder %s27, 0
      %p96 = por %p94, %p95
      %s98 = sadd.s32 %s97, 1
      %p101 = scmp.eq.s32.totalorder %s21, 1
      %p102 = scmp.ne.s32.totalorder %s97, %s99
      %p103 = scmp.eq.s32.totalorder %s21, 0
      %p104 = por %p102, %p103
      %p105 = scmp.ne.s32.totalorder %s97, %s99
      %p106 = scmp.eq.s32.totalorder %s26, 1
      %p107 = por %p105, %p106
      %p108 = scmp.ne.s32.totalorder %s99, %s100
      %p109 = scmp.eq.s32.totalorder %s26, 0
      %p110 = por %p108, %p109
      %p111 = scmp.ne.s32.totalorder %s99, %s100
      %p112 = scmp.eq.s32.totalorder %s27, 1
      %p113 = por %p111, %p112
      %p115 = scmp.ne.s32.totalorder %s100, %s114
      %p116 = scmp.eq.s32.totalorder %s27, 0
      %p117 = por %p115, %p116
      %s119 = sadd.s32 %s118, 1
      %p122 = scmp.eq.s32.totalorder %s21, 1
      %p123 = scmp.ne.s32.totalorder %s118, %s120
      %p124 = scmp.eq.s32.totalorder %s21, 0
      %p125 = por %p123, %p124
      %p126 = scmp.ne.s32.totalorder %s118, %s120
      %p127 = scmp.eq.s32.totalorder %s26, 1
      %p128 = por %p126, %p127
      %p129 = scmp.ne.s32.totalorder %s120, %s121
      %p130 = scmp.eq.s32.totalorder %s26, 0
      %p131 = por %p129, %p130
      %p132 = scmp.ne.s32.totalorder %s120, %s121
      %p133 = scmp.eq.s32.totalorder %s27, 1
      %p134 = por %p132, %p133
      %p136 = scmp.ne.s32.totalorder %s121, %s135
      %p137 = scmp.eq.s32.totalorder %s27, 0
      %p138 = por %p136, %p137
      %s140 = sadd.s32 %s139, 1
      %p143 = scmp.eq.s32.totalorder %s21, 1
      %p144 = scmp.ne.s32.totalorder %s139, %s141
      %p145 = scmp.eq.s32.totalorder %s21, 0
      %p146 = por %p144, %p145
      %p147 = scmp.ne.s32.totalorder %s139, %s141
      %p148 = scmp.eq.s32.totalorder %s26, 1
      %p149 = por %p147, %p148
      %p150 = scmp.ne.s32.totalorder %s141, %s142
      %p151 = scmp.eq.s32.totalorder %s26, 0
      %p152 = por %p150, %p151
      %p153 = scmp.ne.s32.totalorder %s141, %s142
      %p154 = scmp.eq.s32.totalorder %s27, 1
      %p155 = por %p153, %p154
      %p157 = scmp.ne.s32.totalorder %s142, %s156
      %p158 = scmp.eq.s32.totalorder %s27, 0
      %p159 = por %p157, %p158
      %s160 = ssub.s32 %s21, %s28
      %p161 = scmp.eq.s32.totalorder %s160, 0
      %s163 = sadd.s32 %s162, 1
      %s164 = scalar_select %p161, %s162, %s163
      %p167 = pneg %p161
      %p168 = scmp.eq.s32.totalorder %s21, 1
      %p169 = por %p167, %p168
      %p170 = scmp.ne.s32.totalorder %s162, %s165
      %p171 = scmp.eq.s32.totalorder %s21, 0
      %p172 = por %p170, %p171
      %p173 = scmp.ne.s32.totalorder %s162, %s165
      %p174 = scmp.eq.s32.totalorder %s26, 1
      %p175 = por %p173, %p174
      %p176 = scmp.ne.s32.totalorder %s165, %s166
      %p177 = scmp.eq.s32.totalorder %s26, 0
      %p178 = por %p176, %p177
      %p179 = scmp.ne.s32.totalorder %s165, %s166
      %p180 = scmp.eq.s32.totalorder %s27, 1
      %p181 = por %p179, %p180
      %p183 = scmp.ne.s32.totalorder %s166, %s182
      %p184 = scmp.eq.s32.totalorder %s27, 0
      %p185 = por %p183, %p184
      %p186 = scmp.le.s32.totalorder 1, %s21
      %p187 = scmp.lt.s32.totalorder %s21, 3
      %p188 = pnand %p186, %p187
      %p189 = pneg %p188
      // Predicated region
      $region9: #{preact_block_forward.1} parent=5 // pred_check
        _
      $region10: #{preact_block_forward.1} parent=5 // pred_check_branch
        %191 = sbr.rel (%p188) target = $region12
      $region11: #{preact_block_forward.1} parent=5 // pred_region
        %s192 = ssub.s32 %s21, 1
        // Predicated region
        $region13: #{preact_block_forward.1} parent=11 // pred_check
          %p193 = pneg %p68
        $region14: #{preact_block_forward.1} parent=11 // pred_check_branch
          %195 = sbr.rel (%p193) target = $region16
        $region15: #{preact_block_forward.1} parent=11 // pred_region
          %s197 = ssub.s32 16, 16
          %198 = vsyncadd [#allocation6], %s197
          %s200 = sshll.u32 [#allocation5], 4
          %s201 = int_to_ptr.vmem [resolvable:$true] %s200
          %203 = dma.hbm_to_vmem [thread:$0]  %s1, 16, %s201, [#allocation6]
        $region16: #{preact_block_forward.1} parent=11 // pred_fallthru
          _
        // Predicated region
        $region17: #{preact_block_forward.1} parent=11 // pred_check
          %p204 = pneg %p89
        $region18: #{preact_block_forward.1} parent=11 // pred_check_branch
          %206 = sbr.rel (%p204) target = $region20
        $region19: #{preact_block_forward.1} parent=11 // pred_region
          %s208 = ssub.s32 16, 16
          %209 = vsyncadd [#allocation6], %s208
          %s211 = sshll.u32 [#allocation7], 4
          %s212 = int_to_ptr.vmem [resolvable:$true] %s211
          %214 = dma.hbm_to_vmem [thread:$0]  %s2, 16, %s212, [#allocation6]
        $region20: #{preact_block_forward.1} parent=11 // pred_fallthru
          _
        // Predicated region
        $region21: #{preact_block_forward.1} parent=11 // pred_check
          %p215 = pneg %p110
        $region22: #{preact_block_forward.1} parent=11 // pred_check_branch
          %217 = sbr.rel (%p215) target = $region24
        $region23: #{preact_block_forward.1} parent=11 // pred_region
          %s219 = ssub.s32 3072, 3072
          %220 = vsyncadd [#allocation9], %s219
          %s221 = sshll.u32 [#allocation8], 4
          %s222 = int_to_ptr.vmem [resolvable:$true] %s221
          %227 = dma.hbm_to_vmem [thread:$0]  %s3, 3072, %s222, [#allocation9], 128, 128, 8
        $region24: #{preact_block_forward.1} parent=11 // pred_fallthru
          _
        // Predicated region
        $region25: #{preact_block_forward.1} parent=11 // pred_check
          %p228 = pneg %p131
        $region26: #{preact_block_forward.1} parent=11 // pred_check_branch
          %230 = sbr.rel (%p228) target = $region28
        $region27: #{preact_block_forward.1} parent=11 // pred_region
          %s232 = ssub.s32 16, 16
          %233 = vsyncadd [#allocation9], %s232
          %s235 = sshll.u32 [#allocation10], 4
          %s236 = int_to_ptr.vmem [resolvable:$true] %s235
          %238 = dma.hbm_to_vmem [thread:$0]  %s4, 16, %s236, [#allocation9]
        $region28: #{preact_block_forward.1} parent=11 // pred_fallthru
          _
        // Predicated region
        $region29: #{preact_block_forward.1} parent=11 // pred_check
          %p239 = pneg %p152
        $region30: #{preact_block_forward.1} parent=11 // pred_check_branch
          %241 = sbr.rel (%p239) target = $region32
        $region31: #{preact_block_forward.1} parent=11 // pred_region
          %s243 = ssub.s32 3072, 3072
          %244 = vsyncadd [#allocation12], %s243
          %s245 = sshll.u32 [#allocation11], 4
          %s246 = int_to_ptr.vmem [resolvable:$true] %s245
          %251 = dma.hbm_to_vmem [thread:$0]  %s5, 3072, %s246, [#allocation12], 64, 64, 4
        $region32: #{preact_block_forward.1} parent=11 // pred_fallthru
          _
      $region12: #{preact_block_forward.1} parent=5 // pred_fallthru
        _
      %p252 = scmp.lt.s32.totalorder %s21, 2
      // Predicated region
      $region33: #{preact_block_forward.1} parent=5 // pred_check
        %p253 = pneg %p252
      $region34: #{preact_block_forward.1} parent=5 // pred_check_branch
        %255 = sbr.rel (%p253) target = $region36
      $region35: #{preact_block_forward.1} parent=5 // pred_region
        // Predicated region
        $region37: #{preact_block_forward.1} parent=35 // pred_check
          %p256 = pneg %p41
        $region38: #{preact_block_forward.1} parent=35 // pred_check_branch
          %258 = sbr.rel (%p256) target = $region40
        $region39: #{preact_block_forward.1} parent=35 // pred_region
          %s259 = sand.u32 %s31, 1
          %s260 = scalar_lea.sflag [#allocation3], %s259
          %s261 = sand.u32 %s31, 1
          %s262 = smul.addr %s261, 128
          %s263 = scalar_lea.vmem [#allocation2], %s262
          %s264 = smul.u32 16, %s21
          %s266 = ssub.s32 2048, 2048
          %267 = vsyncadd %s260, %s266
          %s268 = smul.addr %s264, 128
          %s269 = scalar_lea.hbm %s0, %s268
          %s270 = sshll.u32 %s263, 4
          %s271 = int_to_ptr.vmem [resolvable:$true] %s270
          %276 = dma.hbm_to_vmem [thread:$0]  %s269, 2048, %s271, %s260, 128, 128, 8
        $region40: #{preact_block_forward.1} parent=35 // pred_fallthru
          _
      $region36: #{preact_block_forward.1} parent=5 // pred_fallthru
        _
      %p277 = scmp.le.s32.totalorder 1, %s21
      %p278 = scmp.lt.s32.totalorder %s21, 3
      %p279 = pnand %p277, %p278
      %p280 = pneg %p279
      // Predicated region
      $region41: #{preact_block_forward.1} parent=5 // pred_check
        _
      $region42: #{preact_block_forward.1} parent=5 // pred_check_branch
        %282 = sbr.rel (%p279) target = $region44
      $region43: #{preact_block_forward.1} parent=5 // pred_region
        %s283 = ssub.s32 %s21, 1
        %s284 = sand.u32 %s34, 1
        %s285 = scalar_lea.sflag [#allocation3], %s284
        %s286 = sand.u32 %s34, 1
        %s287 = smul.addr %s286, 128
        %s288 = scalar_lea.vmem [#allocation2], %s287
        // Predicated region
        $region45: #{preact_block_forward.1} parent=43 // pred_check
          %p289 = pneg %p47
        $region46: #{preact_block_forward.1} parent=43 // pred_check_branch
          %291 = sbr.rel (%p289) target = $region48
        $region47: #{preact_block_forward.1} parent=43 // pred_region
          %292 = dma.done %s285, 2048
        $region48: #{preact_block_forward.1} parent=43 // pred_fallthru
          _
        // Predicated region
        $region49: #{preact_block_forward.1} parent=43 // pred_check
          %p293 = pneg %p68
        $region50: #{preact_block_forward.1} parent=43 // pred_check_branch
          %295 = sbr.rel (%p293) target = $region52
        $region51: #{preact_block_forward.1} parent=43 // pred_region
          %296 = dma.done [#allocation6], 16
        $region52: #{preact_block_forward.1} parent=43 // pred_fallthru
          _
        // Predicated region
        $region53: #{preact_block_forward.1} parent=43 // pred_check
          %p297 = pneg %p89
        $region54: #{preact_block_forward.1} parent=43 // pred_check_branch
          %299 = sbr.rel (%p297) target = $region56
        $region55: #{preact_block_forward.1} parent=43 // pred_region
          %300 = dma.done [#allocation6], 16
        $region56: #{preact_block_forward.1} parent=43 // pred_fallthru
          _
        // Predicated region
        $region57: #{preact_block_forward.1} parent=43 // pred_check
          %p301 = pneg %p110
        $region58: #{preact_block_forward.1} parent=43 // pred_check_branch
          %303 = sbr.rel (%p301) target = $region60
        $region59: #{preact_block_forward.1} parent=43 // pred_region
          %304 = dma.done [#allocation9], 3072
        $region60: #{preact_block_forward.1} parent=43 // pred_fallthru
          _
        // Predicated region
        $region61: #{preact_block_forward.1} parent=43 // pred_check
          %p305 = pneg %p131
        $region62: #{preact_block_forward.1} parent=43 // pred_check_branch
          %307 = sbr.rel (%p305) target = $region64
        $region63: #{preact_block_forward.1} parent=43 // pred_region
          %308 = dma.done [#allocation9], 16
        $region64: #{preact_block_forward.1} parent=43 // pred_fallthru
          _
        // Predicated region
        $region65: #{preact_block_forward.1} parent=43 // pred_check
          %p309 = pneg %p152
        $region66: #{preact_block_forward.1} parent=43 // pred_check_branch
          %311 = sbr.rel (%p309) target = $region68
        $region67: #{preact_block_forward.1} parent=43 // pred_region
          %312 = dma.done [#allocation12], 3072
        $region68: #{preact_block_forward.1} parent=43 // pred_fallthru
          _
        %s313 = sand.u32 %s34, 1
        %s314 = scalar_lea.sflag [#allocation3], %s313
        %s315 = sand.u32 %s34, 1
        %s316 = smul.addr %s315, 128
        %s317 = scalar_lea.vmem [#allocation2], %s316
        %p318 = pneg %p47
        %p319 = pneg %p44
        %p320 = pneg %p68
        %p321 = pneg %p65
        %p322 = pneg %p89
        %p323 = pneg %p86
        %p324 = pneg %p110
        %p325 = pneg %p107
        %p326 = pneg %p131
        %p327 = pneg %p128
        %p328 = pneg %p152
        %p329 = pneg %p149
        %p330 = pneg %p178
        %p331 = pneg %p175
        %s332 = sand.u32 %s165, 1
        %s333 = scalar_lea.sflag [#allocation4], %s332
        %s334 = sand.u32 %s165, 1
        %s335 = smul.addr %s334, 64
        %s336 = scalar_lea.vmem [#allocation13], %s335
        %s337 = smul.u32 16, %s26
        %s338 = smul.u32 16, %s26
        %v340 = vld [vmem:[%s288] sm:$0xff]
        %v341 = vld [vmem:[%s288 + $0x8] sm:$0xff]
        %v342 = vld [vmem:[%s288 + $0x10] sm:$0xff]
        %v343 = vld [vmem:[%s288 + $0x18] sm:$0xff]
        %v344 = vld [vmem:[%s288 + $0x20] sm:$0xff]
        %v345 = vld [vmem:[%s288 + $0x28] sm:$0xff]
        %v346 = vld [vmem:[%s288 + $0x30] sm:$0xff]
        %v347 = vld [vmem:[%s288 + $0x38] sm:$0xff]
        %v348 = vld [vmem:[%s288 + $0x40] sm:$0xff]
        %v349 = vld [vmem:[%s288 + $0x48] sm:$0xff]
        %v350 = vld [vmem:[%s288 + $0x50] sm:$0xff]
        %v351 = vld [vmem:[%s288 + $0x58] sm:$0xff]
        %v352 = vld [vmem:[%s288 + $0x60] sm:$0xff]
        %v353 = vld [vmem:[%s288 + $0x68] sm:$0xff]
        %v354 = vld [vmem:[%s288 + $0x70] sm:$0xff]
        %v355 = vld [vmem:[%s288 + $0x78] sm:$0xff]
        %v356 = vld [vmem:[#allocation5] sm:$0x1]
        %v358 = vlaneseq
        %v359 = vshrl.u32 %v358, 7
        %v360 = vsub.s32 0, %v359
        %v361 = vrot.slane %v356, %v360
        %v363 = vmul.f32 %v340, %v361
        %v364 = vmul.f32 %v341, %v361
        %v365 = vmul.f32 %v342, %v361
        %v366 = vmul.f32 %v343, %v361
        %v367 = vmul.f32 %v344, %v361
        %v368 = vmul.f32 %v345, %v361
        %v369 = vmul.f32 %v346, %v361
        %v370 = vmul.f32 %v347, %v361
        %v371 = vmul.f32 %v348, %v361
        %v372 = vmul.f32 %v349, %v361
        %v373 = vmul.f32 %v350, %v361
        %v374 = vmul.f32 %v351, %v361
        %v375 = vmul.f32 %v352, %v361
        %v376 = vmul.f32 %v353, %v361
        %v377 = vmul.f32 %v354, %v361
        %v378 = vmul.f32 %v355, %v361
        %v379 = vld [vmem:[#allocation7] sm:$0x1]
        %v381 = vlaneseq
        %v382 = vshrl.u32 %v381, 7
        %v383 = vsub.s32 0, %v382
        %v384 = vrot.slane %v379, %v383
        %v386 = vadd.f32 %v363, %v384
        %v387 = vadd.f32 %v364, %v384
        %v388 = vadd.f32 %v365, %v384
        %v389 = vadd.f32 %v366, %v384
        %v390 = vadd.f32 %v367, %v384
        %v391 = vadd.f32 %v368, %v384
        %v392 = vadd.f32 %v369, %v384
        %v393 = vadd.f32 %v370, %v384
        %v394 = vadd.f32 %v371, %v384
        %v395 = vadd.f32 %v372, %v384
        %v396 = vadd.f32 %v373, %v384
        %v397 = vadd.f32 %v374, %v384
        %v398 = vadd.f32 %v375, %v384
        %v399 = vadd.f32 %v376, %v384
        %v400 = vadd.f32 %v377, %v384
        %v401 = vadd.f32 %v378, %v384
        %v402 = vmax.f32 %v386, 0.0
        %v403 = vmax.f32 %v387, 0.0
        %v404 = vmax.f32 %v388, 0.0
        %v405 = vmax.f32 %v389, 0.0
        %v406 = vmax.f32 %v390, 0.0
        %v407 = vmax.f32 %v391, 0.0
        %v408 = vmax.f32 %v392, 0.0
        %v409 = vmax.f32 %v393, 0.0
        %v410 = vmax.f32 %v394, 0.0
        %v411 = vmax.f32 %v395, 0.0
        %v412 = vmax.f32 %v396, 0.0
        %v413 = vmax.f32 %v397, 0.0
        %v414 = vmax.f32 %v398, 0.0
        %v415 = vmax.f32 %v399, 0.0
        %v416 = vmax.f32 %v400, 0.0
        %v417 = vmax.f32 %v401, 0.0
        %v418 = vlaneseq
        %v419 = vshrl.u32 %v418, 7
        %v420 = vadd.s32 %v419, 8
        %v421 = vadd.s32 %v419, 16
        %v422 = vadd.s32 %v419, 24
        %v423 = vadd.s32 %v419, 32
        %v424 = vadd.s32 %v419, 40
        %v425 = vadd.s32 %v419, 48
        %v426 = vadd.s32 %v419, 56
        %v427 = vadd.s32 %v419, 64
        %v428 = vadd.s32 %v419, 72
        %v429 = vadd.s32 %v419, 80
        %v430 = vadd.s32 %v419, 88
        %v431 = vadd.s32 %v419, 96
        %v432 = vadd.s32 %v419, 104
        %v433 = vadd.s32 %v419, 112
        %v434 = vadd.s32 %v419, 120
        %vm435 = vcmp.lt.s32.totalorder %v419, 0
        %v436 = vsub.s32 0, %v419
        %v437 = vsel %vm435, %v436, %v419
        %v438 = vshrl.u32 %v437, 4
        %v439 = vand.u32 %v437, 15
        %v440 = vsub.s32 0, %v439
        %v441 = vsel %vm435, %v440, %v439
        %vm442 = vcmp.lt.s32.totalorder %v420, 0
        %v443 = vsub.s32 0, %v420
        %v444 = vsel %vm442, %v443, %v420
        %v445 = vshrl.u32 %v444, 4
        %v446 = vand.u32 %v444, 15
        %v447 = vsub.s32 0, %v446
        %v448 = vsel %vm442, %v447, %v446
        %vm449 = vcmp.lt.s32.totalorder %v421, 0
        %v450 = vsub.s32 0, %v421
        %v451 = vsel %vm449, %v450, %v421
        %v452 = vshrl.u32 %v451, 4
        %v453 = vand.u32 %v451, 15
        %v454 = vsub.s32 0, %v453
        %v455 = vsel %vm449, %v454, %v453
        %vm456 = vcmp.lt.s32.totalorder %v422, 0
        %v457 = vsub.s32 0, %v422
        %v458 = vsel %vm456, %v457, %v422
        %v459 = vshrl.u32 %v458, 4
        %v460 = vand.u32 %v458, 15
        %v461 = vsub.s32 0, %v460
        %v462 = vsel %vm456, %v461, %v460
        %vm463 = vcmp.lt.s32.totalorder %v423, 0
        %v464 = vsub.s32 0, %v423
        %v465 = vsel %vm463, %v464, %v423
        %v466 = vshrl.u32 %v465, 4
        %v467 = vand.u32 %v465, 15
        %v468 = vsub.s32 0, %v467
        %v469 = vsel %vm463, %v468, %v467
        %vm470 = vcmp.lt.s32.totalorder %v424, 0
        %v471 = vsub.s32 0, %v424
        %v472 = vsel %vm470, %v471, %v424
        %v473 = vshrl.u32 %v472, 4
        %v474 = vand.u32 %v472, 15
        %v475 = vsub.s32 0, %v474
        %v476 = vsel %vm470, %v475, %v474
        %vm477 = vcmp.lt.s32.totalorder %v425, 0
        %v478 = vsub.s32 0, %v425
        %v479 = vsel %vm477, %v478, %v425
        %v480 = vshrl.u32 %v479, 4
        %v481 = vand.u32 %v479, 15
        %v482 = vsub.s32 0, %v481
        %v483 = vsel %vm477, %v482, %v481
        %vm484 = vcmp.lt.s32.totalorder %v426, 0
        %v485 = vsub.s32 0, %v426
        %v486 = vsel %vm484, %v485, %v426
        %v487 = vshrl.u32 %v486, 4
        %v488 = vand.u32 %v486, 15
        %v489 = vsub.s32 0, %v488
        %v490 = vsel %vm484, %v489, %v488
        %vm491 = vcmp.lt.s32.totalorder %v427, 0
        %v492 = vsub.s32 0, %v427
        %v493 = vsel %vm491, %v492, %v427
        %v494 = vshrl.u32 %v493, 4
        %v495 = vand.u32 %v493, 15
        %v496 = vsub.s32 0, %v495
        %v497 = vsel %vm491, %v496, %v495
        %vm498 = vcmp.lt.s32.totalorder %v428, 0
        %v499 = vsub.s32 0, %v428
        %v500 = vsel %vm498, %v499, %v428
        %v501 = vshrl.u32 %v500, 4
        %v502 = vand.u32 %v500, 15
        %v503 = vsub.s32 0, %v502
        %v504 = vsel %vm498, %v503, %v502
        %vm505 = vcmp.lt.s32.totalorder %v429, 0
        %v506 = vsub.s32 0, %v429
        %v507 = vsel %vm505, %v506, %v429
        %v508 = vshrl.u32 %v507, 4
        %v509 = vand.u32 %v507, 15
        %v510 = vsub.s32 0, %v509
        %v511 = vsel %vm505, %v510, %v509
        %vm512 = vcmp.lt.s32.totalorder %v430, 0
        %v513 = vsub.s32 0, %v430
        %v514 = vsel %vm512, %v513, %v430
        %v515 = vshrl.u32 %v514, 4
        %v516 = vand.u32 %v514, 15
        %v517 = vsub.s32 0, %v516
        %v518 = vsel %vm512, %v517, %v516
        %vm519 = vcmp.lt.s32.totalorder %v431, 0
        %v520 = vsub.s32 0, %v431
        %v521 = vsel %vm519, %v520, %v431
        %v522 = vshrl.u32 %v521, 4
        %v523 = vand.u32 %v521, 15
        %v524 = vsub.s32 0, %v523
        %v525 = vsel %vm519, %v524, %v523
        %vm526 = vcmp.lt.s32.totalorder %v432, 0
        %v527 = vsub.s32 0, %v432
        %v528 = vsel %vm526, %v527, %v432
        %v529 = vshrl.u32 %v528, 4
        %v530 = vand.u32 %v528, 15
        %v531 = vsub.s32 0, %v530
        %v532 = vsel %vm526, %v531, %v530
        %vm533 = vcmp.lt.s32.totalorder %v433, 0
        %v534 = vsub.s32 0, %v433
        %v535 = vsel %vm533, %v534, %v433
        %v536 = vshrl.u32 %v535, 4
        %v537 = vand.u32 %v535, 15
        %v538 = vsub.s32 0, %v537
        %v539 = vsel %vm533, %v538, %v537
        %vm540 = vcmp.lt.s32.totalorder %v434, 0
        %v541 = vsub.s32 0, %v434
        %v542 = vsel %vm540, %v541, %v434
        %v543 = vshrl.u32 %v542, 4
        %v544 = vand.u32 %v542, 15
        %v545 = vsub.s32 0, %v544
        %v546 = vsel %vm540, %v545, %v544
        %vm547 = vcmp.ne.s32.totalorder %v441, 0
        %vm548 = vcmp.ne.s32.totalorder %v448, 0
        %vm549 = vcmp.ne.s32.totalorder %v455, 0
        %vm550 = vcmp.ne.s32.totalorder %v462, 0
        %vm551 = vcmp.ne.s32.totalorder %v469, 0
        %vm552 = vcmp.ne.s32.totalorder %v476, 0
        %vm553 = vcmp.ne.s32.totalorder %v483, 0
        %vm554 = vcmp.ne.s32.totalorder %v490, 0
        %vm555 = vcmp.ne.s32.totalorder %v497, 0
        %vm556 = vcmp.ne.s32.totalorder %v504, 0
        %vm557 = vcmp.ne.s32.totalorder %v511, 0
        %vm558 = vcmp.ne.s32.totalorder %v518, 0
        %vm559 = vcmp.ne.s32.totalorder %v525, 0
        %vm560 = vcmp.ne.s32.totalorder %v532, 0
        %vm561 = vcmp.ne.s32.totalorder %v539, 0
        %vm562 = vcmp.ne.s32.totalorder %v546, 0
        %vm563 = vcmp.lt.s32.totalorder %v441, 0
        %vm564 = vcmp.lt.s32.totalorder %v448, 0
        %vm565 = vcmp.lt.s32.totalorder %v455, 0
        %vm566 = vcmp.lt.s32.totalorder %v462, 0
        %vm567 = vcmp.lt.s32.totalorder %v469, 0
        %vm568 = vcmp.lt.s32.totalorder %v476, 0
        %vm569 = vcmp.lt.s32.totalorder %v483, 0
        %vm570 = vcmp.lt.s32.totalorder %v490, 0
        %vm571 = vcmp.lt.s32.totalorder %v497, 0
        %vm572 = vcmp.lt.s32.totalorder %v504, 0
        %vm573 = vcmp.lt.s32.totalorder %v511, 0
        %vm574 = vcmp.lt.s32.totalorder %v518, 0
        %vm575 = vcmp.lt.s32.totalorder %v525, 0
        %vm576 = vcmp.lt.s32.totalorder %v532, 0
        %vm577 = vcmp.lt.s32.totalorder %v539, 0
        %vm578 = vcmp.lt.s32.totalorder %v546, 0
        %vm579 = vmand %vm563, %vm547
        %vm580 = vmand %vm564, %vm548
        %vm581 = vmand %vm565, %vm549
        %vm582 = vmand %vm566, %vm550
        %vm583 = vmand %vm567, %vm551
        %vm584 = vmand %vm568, %vm552
        %vm585 = vmand %vm569, %vm553
        %vm586 = vmand %vm570, %vm554
        %vm587 = vmand %vm571, %vm555
        %vm588 = vmand %vm572, %vm556
        %vm589 = vmand %vm573, %vm557
        %vm590 = vmand %vm574, %vm558
        %vm591 = vmand %vm575, %vm559
        %vm592 = vmand %vm576, %vm560
        %vm593 = vmand %vm577, %vm561
        %vm594 = vmand %vm578, %vm562
        %v595 = vadd.s32 %v441, 16
        %v596 = vadd.s32 %v448, 16
        %v597 = vadd.s32 %v455, 16
        %v598 = vadd.s32 %v462, 16
        %v599 = vadd.s32 %v469, 16
        %v600 = vadd.s32 %v476, 16
        %v601 = vadd.s32 %v483, 16
        %v602 = vadd.s32 %v490, 16
        %v603 = vadd.s32 %v497, 16
        %v604 = vadd.s32 %v504, 16
        %v605 = vadd.s32 %v511, 16
        %v606 = vadd.s32 %v518, 16
        %v607 = vadd.s32 %v525, 16
        %v608 = vadd.s32 %v532, 16
        %v609 = vadd.s32 %v539, 16
        %v610 = vadd.s32 %v546, 16
        %v611 = vsel %vm579, %v595, %v441
        %v612 = vsel %vm580, %v596, %v448
        %v613 = vsel %vm581, %v597, %v455
        %v614 = vsel %vm582, %v598, %v462
        %v615 = vsel %vm583, %v599, %v469
        %v616 = vsel %vm584, %v600, %v476
        %v617 = vsel %vm585, %v601, %v483
        %v618 = vsel %vm586, %v602, %v490
        %v619 = vsel %vm587, %v603, %v497
        %v620 = vsel %vm588, %v604, %v504
        %v621 = vsel %vm589, %v605, %v511
        %v622 = vsel %vm590, %v606, %v518
        %v623 = vsel %vm591, %v607, %v525
        %v624 = vsel %vm592, %v608, %v532
        %v625 = vsel %vm593, %v609, %v539
        %v626 = vsel %vm594, %v610, %v546
        %vm627 = vcmp.ne.s32.totalorder %v611, 0
        %vm628 = vcmp.ne.s32.totalorder %v612, 0
        %vm629 = vcmp.ne.s32.totalorder %v613, 0
        %vm630 = vcmp.ne.s32.totalorder %v614, 0
        %vm631 = vcmp.ne.s32.totalorder %v615, 0
        %vm632 = vcmp.ne.s32.totalorder %v616, 0
        %vm633 = vcmp.ne.s32.totalorder %v617, 0
        %vm634 = vcmp.ne.s32.totalorder %v618, 0
        %vm635 = vcmp.ne.s32.totalorder %v619, 0
        %vm636 = vcmp.ne.s32.totalorder %v620, 0
        %vm637 = vcmp.ne.s32.totalorder %v621, 0
        %vm638 = vcmp.ne.s32.totalorder %v622, 0
        %vm639 = vcmp.ne.s32.totalorder %v623, 0
        %vm640 = vcmp.ne.s32.totalorder %v624, 0
        %vm641 = vcmp.ne.s32.totalorder %v625, 0
        %vm642 = vcmp.ne.s32.totalorder %v626, 0
        %vm643 = vcmp.ne.s32.totalorder %v611, 15
        %vm644 = vcmp.ne.s32.totalorder %v612, 15
        %vm645 = vcmp.ne.s32.totalorder %v613, 15
        %vm646 = vcmp.ne.s32.totalorder %v614, 15
        %vm647 = vcmp.ne.s32.totalorder %v615, 15
        %vm648 = vcmp.ne.s32.totalorder %v616, 15
        %vm649 = vcmp.ne.s32.totalorder %v617, 15
        %vm650 = vcmp.ne.s32.totalorder %v618, 15
        %vm651 = vcmp.ne.s32.totalorder %v619, 15
        %vm652 = vcmp.ne.s32.totalorder %v620, 15
        %vm653 = vcmp.ne.s32.totalorder %v621, 15
        %vm654 = vcmp.ne.s32.totalorder %v622, 15
        %vm655 = vcmp.ne.s32.totalorder %v623, 15
        %vm656 = vcmp.ne.s32.totalorder %v624, 15
        %vm657 = vcmp.ne.s32.totalorder %v625, 15
        %vm658 = vcmp.ne.s32.totalorder %v626, 15
        %v659 = vrot.slane %v402, 7
        %v660 = vrot.slane %v403, 7
        %v661 = vrot.slane %v404, 7
        %v662 = vrot.slane %v405, 7
        %v663 = vrot.slane %v406, 7
        %v664 = vrot.slane %v407, 7
        %v665 = vrot.slane %v408, 7
        %v666 = vrot.slane %v409, 7
        %v667 = vrot.slane %v410, 7
        %v668 = vrot.slane %v411, 7
        %v669 = vrot.slane %v412, 7
        %v670 = vrot.slane %v413, 7
        %v671 = vrot.slane %v414, 7
        %v672 = vrot.slane %v415, 7
        %v673 = vrot.slane %v416, 7
        %v674 = vrot.slane %v417, 7
        %vm675 = vcmp.lt.s32.totalorder %v419, 1
        %v676 = vsel %vm675, %v673, %v674
        %v677 = vsel %vm675, %v672, %v673
        %v678 = vsel %vm675, %v671, %v672
        %v679 = vsel %vm675, %v670, %v671
        %v680 = vsel %vm675, %v669, %v670
        %v681 = vsel %vm675, %v668, %v669
        %v682 = vsel %vm675, %v667, %v668
        %v683 = vsel %vm675, %v666, %v667
        %v684 = vsel %vm675, %v665, %v666
        %v685 = vsel %vm675, %v664, %v665
        %v686 = vsel %vm675, %v663, %v664
        %v687 = vsel %vm675, %v662, %v663
        %v688 = vsel %vm675, %v661, %v662
        %v689 = vsel %vm675, %v660, %v661
        %v690 = vsel %vm675, %v659, %v660
        %v691 = vsel %vm675, %v674, %v659
        %v692 = vsel %vm627, 1, 0
        %v693 = vsel %vm628, 1, 0
        %v694 = vsel %vm629, 1, 0
        %v695 = vsel %vm630, 1, 0
        %v696 = vsel %vm631, 1, 0
        %v697 = vsel %vm632, 1, 0
        %v698 = vsel %vm633, 1, 0
        %v699 = vsel %vm634, 1, 0
        %v700 = vsel %vm635, 1, 0
        %v701 = vsel %vm636, 1, 0
        %v702 = vsel %vm637, 1, 0
        %v703 = vsel %vm638, 1, 0
        %v704 = vsel %vm639, 1, 0
        %v705 = vsel %vm640, 1, 0
        %v706 = vsel %vm641, 1, 0
        %v707 = vsel %vm642, 1, 0
        %vm708 = vcmp.eq.s32.totalorder %v692, 1
        %vm709 = vcmp.eq.s32.totalorder %v693, 1
        %vm710 = vcmp.eq.s32.totalorder %v694, 1
        %vm711 = vcmp.eq.s32.totalorder %v695, 1
        %vm712 = vcmp.eq.s32.totalorder %v696, 1
        %vm713 = vcmp.eq.s32.totalorder %v697, 1
        %vm714 = vcmp.eq.s32.totalorder %v698, 1
        %vm715 = vcmp.eq.s32.totalorder %v699, 1
        %vm716 = vcmp.eq.s32.totalorder %v700, 1
        %vm717 = vcmp.eq.s32.totalorder %v701, 1
        %vm718 = vcmp.eq.s32.totalorder %v702, 1
        %vm719 = vcmp.eq.s32.totalorder %v703, 1
        %vm720 = vcmp.eq.s32.totalorder %v704, 1
        %vm721 = vcmp.eq.s32.totalorder %v705, 1
        %vm722 = vcmp.eq.s32.totalorder %v706, 1
        %vm723 = vcmp.eq.s32.totalorder %v707, 1
        %v724 = vsel %vm708, %v691, 0.0
        %v725 = vsel %vm709, %v690, 0.0
        %v726 = vsel %vm710, %v689, 0.0
        %v727 = vsel %vm711, %v688, 0.0
        %v728 = vsel %vm712, %v687, 0.0
        %v729 = vsel %vm713, %v686, 0.0
        %v730 = vsel %vm714, %v685, 0.0
        %v731 = vsel %vm715, %v684, 0.0
        %v732 = vsel %vm716, %v683, 0.0
        %v733 = vsel %vm717, %v682, 0.0
        %v734 = vsel %vm718, %v681, 0.0
        %v735 = vsel %vm719, %v680, 0.0
        %v736 = vsel %vm720, %v679, 0.0
        %v737 = vsel %vm721, %v678, 0.0
        %v738 = vsel %vm722, %v677, 0.0
        %v739 = vsel %vm723, %v676, 0.0
        %v740 = vrot.slane %v402, 1
        %v741 = vrot.slane %v403, 1
        %v742 = vrot.slane %v404, 1
        %v743 = vrot.slane %v405, 1
        %v744 = vrot.slane %v406, 1
        %v745 = vrot.slane %v407, 1
        %v746 = vrot.slane %v408, 1
        %v747 = vrot.slane %v409, 1
        %v748 = vrot.slane %v410, 1
        %v749 = vrot.slane %v411, 1
        %v750 = vrot.slane %v412, 1
        %v751 = vrot.slane %v413, 1
        %v752 = vrot.slane %v414, 1
        %v753 = vrot.slane %v415, 1
        %v754 = vrot.slane %v416, 1
        %v755 = vrot.slane %v417, 1
        %vm756 = vcmp.lt.s32.totalorder %v419, 7
        %v757 = vsel %vm756, %v754, %v755
        %v758 = vsel %vm756, %v753, %v754
        %v759 = vsel %vm756, %v752, %v753
        %v760 = vsel %vm756, %v751, %v752
        %v761 = vsel %vm756, %v750, %v751
        %v762 = vsel %vm756, %v749, %v750
        %v763 = vsel %vm756, %v748, %v749
        %v764 = vsel %vm756, %v747, %v748
        %v765 = vsel %vm756, %v746, %v747
        %v766 = vsel %vm756, %v745, %v746
        %v767 = vsel %vm756, %v744, %v745
        %v768 = vsel %vm756, %v743, %v744
        %v769 = vsel %vm756, %v742, %v743
        %v770 = vsel %vm756, %v741, %v742
        %v771 = vsel %vm756, %v740, %v741
        %v772 = vsel %vm756, %v755, %v740
        %v773 = vsel %vm643, 1, 0
        %v774 = vsel %vm644, 1, 0
        %v775 = vsel %vm645, 1, 0
        %v776 = vsel %vm646, 1, 0
        %v777 = vsel %vm647, 1, 0
        %v778 = vsel %vm648, 1, 0
        %v779 = vsel %vm649, 1, 0
        %v780 = vsel %vm650, 1, 0
        %v781 = vsel %vm651, 1, 0
        %v782 = vsel %vm652, 1, 0
        %v783 = vsel %vm653, 1, 0
        %v784 = vsel %vm654, 1, 0
        %v785 = vsel %vm655, 1, 0
        %v786 = vsel %vm656, 1, 0
        %v787 = vsel %vm657, 1, 0
        %v788 = vsel %vm658, 1, 0
        %vm789 = vcmp.eq.s32.totalorder %v773, 1
        %vm790 = vcmp.eq.s32.totalorder %v774, 1
        %vm791 = vcmp.eq.s32.totalorder %v775, 1
        %vm792 = vcmp.eq.s32.totalorder %v776, 1
        %vm793 = vcmp.eq.s32.totalorder %v777, 1
        %vm794 = vcmp.eq.s32.totalorder %v778, 1
        %vm795 = vcmp.eq.s32.totalorder %v779, 1
        %vm796 = vcmp.eq.s32.totalorder %v780, 1
        %vm797 = vcmp.eq.s32.totalorder %v781, 1
        %vm798 = vcmp.eq.s32.totalorder %v782, 1
        %vm799 = vcmp.eq.s32.totalorder %v783, 1
        %vm800 = vcmp.eq.s32.totalorder %v784, 1
        %vm801 = vcmp.eq.s32.totalorder %v785, 1
        %vm802 = vcmp.eq.s32.totalorder %v786, 1
        %vm803 = vcmp.eq.s32.totalorder %v787, 1
        %vm804 = vcmp.eq.s32.totalorder %v788, 1
        %v805 = vsel %vm789, %v771, 0.0
        %v806 = vsel %vm790, %v770, 0.0
        %v807 = vsel %vm791, %v769, 0.0
        %v808 = vsel %vm792, %v768, 0.0
        %v809 = vsel %vm793, %v767, 0.0
        %v810 = vsel %vm794, %v766, 0.0
        %v811 = vsel %vm795, %v765, 0.0
        %v812 = vsel %vm796, %v764, 0.0
        %v813 = vsel %vm797, %v763, 0.0
        %v814 = vsel %vm798, %v762, 0.0
        %v815 = vsel %vm799, %v761, 0.0
        %v816 = vsel %vm800, %v760, 0.0
        %v817 = vsel %vm801, %v759, 0.0
        %v818 = vsel %vm802, %v758, 0.0
        %v819 = vsel %vm803, %v757, 0.0
        %v820 = vsel %vm804, %v772, 0.0
        %837 = vrot.lane.b32.xlu0 %v402, 64
        %v838 = vpop.permute.xlu0 %837
        %839 = vrot.lane.b32.xlu0 %v403, 64
        %v840 = vpop.permute.xlu0 %839
        %841 = vrot.lane.b32.xlu0 %v404, 64
        %v842 = vpop.permute.xlu0 %841
        %843 = vrot.lane.b32.xlu0 %v405, 64
        %v844 = vpop.permute.xlu0 %843
        %845 = vrot.lane.b32.xlu0 %v406, 64
        %v846 = vpop.permute.xlu0 %845
        %847 = vrot.lane.b32.xlu0 %v407, 64
        %v848 = vpop.permute.xlu0 %847
        %849 = vrot.lane.b32.xlu0 %v408, 64
        %v850 = vpop.permute.xlu0 %849
        %851 = vrot.lane.b32.xlu0 %v409, 64
        %v852 = vpop.permute.xlu0 %851
        %853 = vrot.lane.b32.xlu0 %v410, 64
        %v854 = vpop.permute.xlu0 %853
        %855 = vrot.lane.b32.xlu0 %v411, 64
        %v856 = vpop.permute.xlu0 %855
        %857 = vrot.lane.b32.xlu0 %v412, 64
        %v858 = vpop.permute.xlu0 %857
        %859 = vrot.lane.b32.xlu0 %v413, 64
        %v860 = vpop.permute.xlu0 %859
        %861 = vrot.lane.b32.xlu0 %v414, 64
        %v862 = vpop.permute.xlu0 %861
        %863 = vrot.lane.b32.xlu0 %v415, 64
        %v864 = vpop.permute.xlu0 %863
        %865 = vrot.lane.b32.xlu0 %v416, 64
        %v866 = vpop.permute.xlu0 %865
        %867 = vrot.lane.b32.xlu0 %v417, 64
        %v868 = vpop.permute.xlu0 %867
        %vm885 = vcmask 523264
        %v886 = vsel %vm885, %v724, %v838
        %v887 = vsel %vm885, %v725, %v840
        %v888 = vsel %vm885, %v726, %v842
        %v889 = vsel %vm885, %v727, %v844
        %v890 = vsel %vm885, %v728, %v846
        %v891 = vsel %vm885, %v729, %v848
        %v892 = vsel %vm885, %v730, %v850
        %v893 = vsel %vm885, %v731, %v852
        %v894 = vsel %vm885, %v732, %v854
        %v895 = vsel %vm885, %v733, %v856
        %v896 = vsel %vm885, %v734, %v858
        %v897 = vsel %vm885, %v735, %v860
        %v898 = vsel %vm885, %v736, %v862
        %v899 = vsel %vm885, %v737, %v864
        %v900 = vsel %vm885, %v738, %v866
        %v901 = vsel %vm885, %v739, %v868
        %v902 = vpack.c.bf16 %v887, %v886
        %v903 = vpack.c.bf16 %v806, %v805
        %v904 = vpack.c.bf16 %v889, %v888
        %v905 = vpack.c.bf16 %v808, %v807
        %v906 = vpack.c.bf16 %v891, %v890
        %v907 = vpack.c.bf16 %v810, %v809
        %v908 = vpack.c.bf16 %v893, %v892
        %v909 = vpack.c.bf16 %v812, %v811
        %v910 = vpack.c.bf16 %v895, %v894
        %v911 = vpack.c.bf16 %v814, %v813
        %v912 = vpack.c.bf16 %v897, %v896
        %v913 = vpack.c.bf16 %v816, %v815
        %v914 = vpack.c.bf16 %v899, %v898
        %v915 = vpack.c.bf16 %v818, %v817
        %v916 = vpack.c.bf16 %v901, %v900
        %v917 = vpack.c.bf16 %v820, %v819
        %v918 = vld [vmem:[#allocation8] sm:$0xff]
        %v919 = vld [vmem:[#allocation8 + $0x8] sm:$0xff]
        %v920 = vld [vmem:[#allocation8 + $0x10] sm:$0xff]
        %v921 = vld [vmem:[#allocation8 + $0x18] sm:$0xff]
        %v922 = vld [vmem:[#allocation8 + $0x20] sm:$0xff]
        %v923 = vld [vmem:[#allocation8 + $0x28] sm:$0xff]
        %v924 = vld [vmem:[#allocation8 + $0x30] sm:$0xff]
        %v925 = vld [vmem:[#allocation8 + $0x38] sm:$0xff]
        %v926 = vld [vmem:[#allocation8 + $0x40] sm:$0xff]
        %v927 = vld [vmem:[#allocation8 + $0x48] sm:$0xff]
        %v928 = vld [vmem:[#allocation8 + $0x50] sm:$0xff]
        %v929 = vld [vmem:[#allocation8 + $0x58] sm:$0xff]
        %v930 = vld [vmem:[#allocation8 + $0x60] sm:$0xff]
        %v931 = vld [vmem:[#allocation8 + $0x68] sm:$0xff]
        %v932 = vld [vmem:[#allocation8 + $0x70] sm:$0xff]
        %v933 = vld [vmem:[#allocation8 + $0x78] sm:$0xff]
        %v934 = vld [vmem:[#allocation8 + $0x80] sm:$0xff]
        %v935 = vld [vmem:[#allocation8 + $0x88] sm:$0xff]
        %v936 = vld [vmem:[#allocation8 + $0x90] sm:$0xff]
        %v937 = vld [vmem:[#allocation8 + $0x98] sm:$0xff]
        %v938 = vld [vmem:[#allocation8 + $0xa0] sm:$0xff]
        %v939 = vld [vmem:[#allocation8 + $0xa8] sm:$0xff]
        %v940 = vld [vmem:[#allocation8 + $0xb0] sm:$0xff]
        %v941 = vld [vmem:[#allocation8 + $0xb8] sm:$0xff]
        %v966 = vunpack.c.l.b16 %v918
        %v967 = vunpack.c.h.b16 %v918
        %v968 = vunpack.c.l.b16 %v919
        %v969 = vunpack.c.h.b16 %v919
        %v970 = vunpack.c.l.b16 %v920
        %v971 = vunpack.c.h.b16 %v920
        %v972 = vunpack.c.l.b16 %v921
        %v973 = vunpack.c.h.b16 %v921
        %v974 = vunpack.c.l.b16 %v922
        %v975 = vunpack.c.h.b16 %v922
        %v976 = vunpack.c.l.b16 %v923
        %v977 = vunpack.c.h.b16 %v923
        %v978 = vunpack.c.l.b16 %v924
        %v979 = vunpack.c.h.b16 %v924
        %v980 = vunpack.c.l.b16 %v925
        %v981 = vunpack.c.h.b16 %v925
        %v982 = vunpack.c.l.b16 %v926
        %v983 = vunpack.c.h.b16 %v926
        %v984 = vunpack.c.l.b16 %v927
        %v985 = vunpack.c.h.b16 %v927
        %v986 = vunpack.c.l.b16 %v928
        %v987 = vunpack.c.h.b16 %v928
        %v988 = vunpack.c.l.b16 %v929
        %v989 = vunpack.c.h.b16 %v929
        %v990 = vunpack.c.l.b16 %v930
        %v991 = vunpack.c.h.b16 %v930
        %v992 = vunpack.c.l.b16 %v931
        %v993 = vunpack.c.h.b16 %v931
        %v994 = vunpack.c.l.b16 %v932
        %v995 = vunpack.c.h.b16 %v932
        %v996 = vunpack.c.l.b16 %v933
        %v997 = vunpack.c.h.b16 %v933
        %v998 = vunpack.c.l.b16 %v934
        %v999 = vunpack.c.h.b16 %v934
        %v1000 = vunpack.c.l.b16 %v935
        %v1001 = vunpack.c.h.b16 %v935
        %v1002 = vunpack.c.l.b16 %v936
        %v1003 = vunpack.c.h.b16 %v936
        %v1004 = vunpack.c.l.b16 %v937
        %v1005 = vunpack.c.h.b16 %v937
        %v1006 = vunpack.c.l.b16 %v938
        %v1007 = vunpack.c.h.b16 %v938
        %v1008 = vunpack.c.l.b16 %v939
        %v1009 = vunpack.c.h.b16 %v939
        %v1010 = vunpack.c.l.b16 %v940
        %v1011 = vunpack.c.h.b16 %v940
        %v1012 = vunpack.c.l.b16 %v941
        %v1013 = vunpack.c.h.b16 %v941
        %v1014 = vpack.c.b16 %v968, %v966
        %v1015 = vpack.c.b16 %v969, %v967
        %v1016 = vpack.c.b16 %v972, %v970
        %v1017 = vpack.c.b16 %v973, %v971
        %v1018 = vpack.c.b16 %v976, %v974
        %v1019 = vpack.c.b16 %v977, %v975
        %v1020 = vpack.c.b16 %v980, %v978
        %v1021 = vpack.c.b16 %v981, %v979
        %v1022 = vpack.c.b16 %v984, %v982
        %v1023 = vpack.c.b16 %v985, %v983
        %v1024 = vpack.c.b16 %v988, %v986
        %v1025 = vpack.c.b16 %v989, %v987
        %v1026 = vpack.c.b16 %v992, %v990
        %v1027 = vpack.c.b16 %v993, %v991
        %v1028 = vpack.c.b16 %v996, %v994
        %v1029 = vpack.c.b16 %v997, %v995
        %v1030 = vpack.c.b16 %v1000, %v998
        %v1031 = vpack.c.b16 %v1001, %v999
        %v1032 = vpack.c.b16 %v1004, %v1002
        %v1033 = vpack.c.b16 %v1005, %v1003
        %v1034 = vpack.c.b16 %v1008, %v1006
        %v1035 = vpack.c.b16 %v1009, %v1007
        %v1036 = vpack.c.b16 %v1012, %v1010
        %v1037 = vpack.c.b16 %v1013, %v1011
        %v1063 = vsel %vm885, %v903, 0
        %v1066 = vsel %vm885, %v905, 0
        %v1069 = vsel %vm885, %v907, 0
        %v1072 = vsel %vm885, %v909, 0
        %v1075 = vsel %vm885, %v911, 0
        %v1078 = vsel %vm885, %v913, 0
        %v1081 = vsel %vm885, %v915, 0
        %v1084 = vsel %vm885, %v917, 0
        %1086 = vmatprep.subr.bf16.mxu0 %v1015
        %1087 = vmatpush1.bf16.msra.mxu0 %v1014
        %1088 = vmatprep.subr.bf16.mxu0 %v1017
        %1089 = vmatpush1.bf16.msra.mxu0 %v1016
        %1090 = vmatprep.subr.bf16.mxu0 %v1019
        %1091 = vmatpush1.bf16.msra.mxu0 %v1018
        %1092 = vmatprep.subr.bf16.mxu0 %v1021
        %1093 = vmatpush1.bf16.msra.mxu0 %v1020
        %1094 = vmatprep.subr.bf16.mxu0 %v1023
        %1095 = vmatpush1.bf16.msra.mxu0 %v1022
        %1096 = vmatprep.subr.bf16.mxu0 %v1025
        %1097 = vmatpush1.bf16.msra.mxu0 %v1024
        %1098 = vmatprep.subr.bf16.mxu0 %v1027
        %1099 = vmatpush1.bf16.msra.mxu0 %v1026
        %1100 = vmatprep.subr.bf16.mxu0 %v1029
        %1101 = vmatpush1.bf16.msra.mxu0 %v1028
        %1102 = vmatprep.subr.bf16.mxu0 %v1031
        %1103 = vmatpush1.bf16.msra.mxu0 %v1030
        %1104 = vmatprep.subr.bf16.mxu0 %v1033
        %1105 = vmatpush1.bf16.msra.mxu0 %v1032
        %1106 = vmatprep.subr.bf16.mxu0 %v1035
        %1107 = vmatpush1.bf16.msra.mxu0 %v1034
        %1108 = vmatprep.subr.bf16.mxu0 %v1037
        %1109 = vmatpush1.bf16.msra.mxu0 %v1036
        %1110 = vmatprep.subr.bf16.mxu0 0
        %1111 = vmatpush1.bf16.msra.mxu0 0
        %1112 = vmatprep.subr.bf16.mxu0 0
        %1113 = vmatpush1.bf16.msra.mxu0 0
        %1114 = vmatprep.subr.bf16.mxu0 0
        %1115 = vmatpush1.bf16.msra.mxu0 0
        %1116 = vmatprep.subr.bf16.mxu0 0
        %1117 = vmatpush1.bf16.msra.mxu0 0
        %1118 = vmatprep.mubr.bf16.mxu0 %v1063
        %1119 = vmatmul.mubr.bf16.gmra.mrb[0].mxu0 %v902
        %v1120 = vpop.f32.mrb[0].mxu0
        %v1121 = vadd.f32 0.0, %v1120
        %v1122 = vpop.f32.mrb[0].mxu0
        %v1123 = vadd.f32 0.0, %v1122
        %v1124 = vpop.f32.mrb[0].mxu0
        %v1125 = vadd.f32 0.0, %v1124
        %v1126 = vpop.f32.mrb[0].mxu0
        %v1127 = vadd.f32 0.0, %v1126
        %1128 = vmatprep.mubr.bf16.mxu0 %v1066
        %1129 = vmatmul.mubr.bf16.gmra.mrb[0].mxu0 %v904
        %v1130 = vpop.f32.mrb[0].mxu0
        %v1131 = vadd.f32 0.0, %v1130
        %v1132 = vpop.f32.mrb[0].mxu0
        %v1133 = vadd.f32 0.0, %v1132
        %v1134 = vpop.f32.mrb[0].mxu0
        %v1135 = vadd.f32 0.0, %v1134
        %v1136 = vpop.f32.mrb[0].mxu0
        %v1137 = vadd.f32 0.0, %v1136
        %1138 = vmatprep.mubr.bf16.mxu0 %v1069
        %1139 = vmatmul.mubr.bf16.gmra.mrb[0].mxu0 %v906
        %v1140 = vpop.f32.mrb[0].mxu0
        %v1141 = vadd.f32 0.0, %v1140
        %v1142 = vpop.f32.mrb[0].mxu0
        %v1143 = vadd.f32 0.0, %v1142
        %v1144 = vpop.f32.mrb[0].mxu0
        %v1145 = vadd.f32 0.0, %v1144
        %v1146 = vpop.f32.mrb[0].mxu0
        %v1147 = vadd.f32 0.0, %v1146
        %1148 = vmatprep.mubr.bf16.mxu0 %v1072
        %1149 = vmatmul.mubr.bf16.gmra.mrb[0].mxu0 %v908
        %v1150 = vpop.f32.mrb[0].mxu0
        %v1151 = vadd.f32 0.0, %v1150
        %v1152 = vpop.f32.mrb[0].mxu0
        %v1153 = vadd.f32 0.0, %v1152
        %v1154 = vpop.f32.mrb[0].mxu0
        %v1155 = vadd.f32 0.0, %v1154
        %v1156 = vpop.f32.mrb[0].mxu0
        %v1157 = vadd.f32 0.0, %v1156
        %1158 = vmatprep.mubr.bf16.mxu0 %v1075
        %1159 = vmatmul.mubr.bf16.gmra.mrb[0].mxu0 %v910
        %v1160 = vpop.f32.mrb[0].mxu0
        %v1161 = vadd.f32 0.0, %v1160
        %v1162 = vpop.f32.mrb[0].mxu0
        %v1163 = vadd.f32 0.0, %v1162
        %v1164 = vpop.f32.mrb[0].mxu0
        %v1165 = vadd.f32 0.0, %v1164
        %v1166 = vpop.f32.mrb[0].mxu0
        %v1167 = vadd.f32 0.0, %v1166
        %1168 = vmatprep.mubr.bf16.mxu0 %v1078
        %1169 = vmatmul.mubr.bf16.gmra.mrb[0].mxu0 %v912
        %v1170 = vpop.f32.mrb[0].mxu0
        %v1171 = vadd.f32 0.0, %v1170
        %v1172 = vpop.f32.mrb[0].mxu0
        %v1173 = vadd.f32 0.0, %v1172
        %v1174 = vpop.f32.mrb[0].mxu0
        %v1175 = vadd.f32 0.0, %v1174
        %v1176 = vpop.f32.mrb[0].mxu0
        %v1177 = vadd.f32 0.0, %v1176
        %1178 = vmatprep.mubr.bf16.mxu0 %v1081
        %1179 = vmatmul.mubr.bf16.gmra.mrb[0].mxu0 %v914
        %v1180 = vpop.f32.mrb[0].mxu0
        %v1181 = vadd.f32 0.0, %v1180
        %v1182 = vpop.f32.mrb[0].mxu0
        %v1183 = vadd.f32 0.0, %v1182
        %v1184 = vpop.f32.mrb[0].mxu0
        %v1185 = vadd.f32 0.0, %v1184
        %v1186 = vpop.f32.mrb[0].mxu0
        %v1187 = vadd.f32 0.0, %v1186
        %1188 = vmatprep.mubr.bf16.mxu0 %v1084
        %1189 = vmatmul.mubr.bf16.gmra.mrb[0].mxu0 %v916
        %v1190 = vpop.f32.mrb[0].mxu0
        %v1191 = vadd.f32 0.0, %v1190
        %v1192 = vpop.f32.mrb[0].mxu0
        %v1193 = vadd.f32 0.0, %v1192
        %v1194 = vpop.f32.mrb[0].mxu0
        %v1195 = vadd.f32 0.0, %v1194
        %v1196 = vpop.f32.mrb[0].mxu0
        %v1197 = vadd.f32 0.0, %v1196
        %1198 = vdwg.mxu0
        %v1199 = vld [vmem:[#allocation10] sm:$0x1]
        %v1201 = vlaneseq
        %v1202 = vshrl.u32 %v1201, 7
        %v1203 = vsub.s32 0, %v1202
        %v1204 = vrot.slane %v1199, %v1203
        %v1206 = vadd.f32 %v1121, %v1204
        %v1207 = vadd.f32 %v1125, %v1204
        %v1208 = vadd.f32 %v1131, %v1204
        %v1209 = vadd.f32 %v1135, %v1204
        %v1210 = vadd.f32 %v1141, %v1204
        %v1211 = vadd.f32 %v1145, %v1204
        %v1212 = vadd.f32 %v1151, %v1204
        %v1213 = vadd.f32 %v1155, %v1204
        %v1214 = vadd.f32 %v1161, %v1204
        %v1215 = vadd.f32 %v1165, %v1204
        %v1216 = vadd.f32 %v1171, %v1204
        %v1217 = vadd.f32 %v1175, %v1204
        %v1218 = vadd.f32 %v1181, %v1204
        %v1219 = vadd.f32 %v1185, %v1204
        %v1220 = vadd.f32 %v1191, %v1204
        %v1221 = vadd.f32 %v1195, %v1204
        %v1222 = vmax.f32 %v1206, 0.0
        %v1223 = vmax.f32 %v1207, 0.0
        %v1224 = vmax.f32 %v1208, 0.0
        %v1225 = vmax.f32 %v1209, 0.0
        %v1226 = vmax.f32 %v1210, 0.0
        %v1227 = vmax.f32 %v1211, 0.0
        %v1228 = vmax.f32 %v1212, 0.0
        %v1229 = vmax.f32 %v1213, 0.0
        %v1230 = vmax.f32 %v1214, 0.0
        %v1231 = vmax.f32 %v1215, 0.0
        %v1232 = vmax.f32 %v1216, 0.0
        %v1233 = vmax.f32 %v1217, 0.0
        %v1234 = vmax.f32 %v1218, 0.0
        %v1235 = vmax.f32 %v1219, 0.0
        %v1236 = vmax.f32 %v1220, 0.0
        %v1237 = vmax.f32 %v1221, 0.0
        %v1238 = vrot.slane %v1222, 7
        %v1239 = vrot.slane %v1223, 7
        %v1240 = vrot.slane %v1224, 7
        %v1241 = vrot.slane %v1225, 7
        %v1242 = vrot.slane %v1226, 7
        %v1243 = vrot.slane %v1227, 7
        %v1244 = vrot.slane %v1228, 7
        %v1245 = vrot.slane %v1229, 7
        %v1246 = vrot.slane %v1230, 7
        %v1247 = vrot.slane %v1231, 7
        %v1248 = vrot.slane %v1232, 7
        %v1249 = vrot.slane %v1233, 7
        %v1250 = vrot.slane %v1234, 7
        %v1251 = vrot.slane %v1235, 7
        %v1252 = vrot.slane %v1236, 7
        %v1253 = vrot.slane %v1237, 7
        %v1254 = vsel %vm675, %v1252, %v1253
        %v1255 = vsel %vm675, %v1251, %v1252
        %v1256 = vsel %vm675, %v1250, %v1251
        %v1257 = vsel %vm675, %v1249, %v1250
        %v1258 = vsel %vm675, %v1248, %v1249
        %v1259 = vsel %vm675, %v1247, %v1248
        %v1260 = vsel %vm675, %v1246, %v1247
        %v1261 = vsel %vm675, %v1245, %v1246
        %v1262 = vsel %vm675, %v1244, %v1245
        %v1263 = vsel %vm675, %v1243, %v1244
        %v1264 = vsel %vm675, %v1242, %v1243
        %v1265 = vsel %vm675, %v1241, %v1242
        %v1266 = vsel %vm675, %v1240, %v1241
        %v1267 = vsel %vm675, %v1239, %v1240
        %v1268 = vsel %vm675, %v1238, %v1239
        %v1269 = vsel %vm675, %v1253, %v1238
        %v1270 = vsel %vm708, %v1269, 0.0
        %v1271 = vsel %vm709, %v1268, 0.0
        %v1272 = vsel %vm710, %v1267, 0.0
        %v1273 = vsel %vm711, %v1266, 0.0
        %v1274 = vsel %vm712, %v1265, 0.0
        %v1275 = vsel %vm713, %v1264, 0.0
        %v1276 = vsel %vm714, %v1263, 0.0
        %v1277 = vsel %vm715, %v1262, 0.0
        %v1278 = vsel %vm716, %v1261, 0.0
        %v1279 = vsel %vm717, %v1260, 0.0
        %v1280 = vsel %vm718, %v1259, 0.0
        %v1281 = vsel %vm719, %v1258, 0.0
        %v1282 = vsel %vm720, %v1257, 0.0
        %v1283 = vsel %vm721, %v1256, 0.0
        %v1284 = vsel %vm722, %v1255, 0.0
        %v1285 = vsel %vm723, %v1254, 0.0
        %v1286 = vrot.slane %v1222, 1
        %v1287 = vrot.slane %v1223, 1
        %v1288 = vrot.slane %v1224, 1
        %v1289 = vrot.slane %v1225, 1
        %v1290 = vrot.slane %v1226, 1
        %v1291 = vrot.slane %v1227, 1
        %v1292 = vrot.slane %v1228, 1
        %v1293 = vrot.slane %v1229, 1
        %v1294 = vrot.slane %v1230, 1
        %v1295 = vrot.slane %v1231, 1
        %v1296 = vrot.slane %v1232, 1
        %v1297 = vrot.slane %v1233, 1
        %v1298 = vrot.slane %v1234, 1
        %v1299 = vrot.slane %v1235, 1
        %v1300 = vrot.slane %v1236, 1
        %v1301 = vrot.slane %v1237, 1
        %v1302 = vsel %vm756, %v1300, %v1301
        %v1303 = vsel %vm756, %v1299, %v1300
        %v1304 = vsel %vm756, %v1298, %v1299
        %v1305 = vsel %vm756, %v1297, %v1298
        %v1306 = vsel %vm756, %v1296, %v1297
        %v1307 = vsel %vm756, %v1295, %v1296
        %v1308 = vsel %vm756, %v1294, %v1295
        %v1309 = vsel %vm756, %v1293, %v1294
        %v1310 = vsel %vm756, %v1292, %v1293
        %v1311 = vsel %vm756, %v1291, %v1292
        %v1312 = vsel %vm756, %v1290, %v1291
        %v1313 = vsel %vm756, %v1289, %v1290
        %v1314 = vsel %vm756, %v1288, %v1289
        %v1315 = vsel %vm756, %v1287, %v1288
        %v1316 = vsel %vm756, %v1286, %v1287
        %v1317 = vsel %vm756, %v1301, %v1286
        %v1318 = vsel %vm789, %v1316, 0.0
        %v1319 = vsel %vm790, %v1315, 0.0
        %v1320 = vsel %vm791, %v1314, 0.0
        %v1321 = vsel %vm792, %v1313, 0.0
        %v1322 = vsel %vm793, %v1312, 0.0
        %v1323 = vsel %vm794, %v1311, 0.0
        %v1324 = vsel %vm795, %v1310, 0.0
        %v1325 = vsel %vm796, %v1309, 0.0
        %v1326 = vsel %vm797, %v1308, 0.0
        %v1327 = vsel %vm798, %v1307, 0.0
        %v1328 = vsel %vm799, %v1306, 0.0
        %v1329 = vsel %vm800, %v1305, 0.0
        %v1330 = vsel %vm801, %v1304, 0.0
        %v1331 = vsel %vm802, %v1303, 0.0
        %v1332 = vsel %vm803, %v1302, 0.0
        %v1333 = vsel %vm804, %v1317, 0.0
        %v1334 = vpack.c.bf16 %v1271, %v1270
        %v1335 = vpack.c.bf16 %v1223, %v1222
        %v1336 = vpack.c.bf16 %v1319, %v1318
        %v1337 = vpack.c.bf16 %v1273, %v1272
        %v1338 = vpack.c.bf16 %v1225, %v1224
        %v1339 = vpack.c.bf16 %v1321, %v1320
        %v1340 = vpack.c.bf16 %v1275, %v1274
        %v1341 = vpack.c.bf16 %v1227, %v1226
        %v1342 = vpack.c.bf16 %v1323, %v1322
        %v1343 = vpack.c.bf16 %v1277, %v1276
        %v1344 = vpack.c.bf16 %v1229, %v1228
        %v1345 = vpack.c.bf16 %v1325, %v1324
        %v1346 = vpack.c.bf16 %v1279, %v1278
        %v1347 = vpack.c.bf16 %v1231, %v1230
        %v1348 = vpack.c.bf16 %v1327, %v1326
        %v1349 = vpack.c.bf16 %v1281, %v1280
        %v1350 = vpack.c.bf16 %v1233, %v1232
        %v1351 = vpack.c.bf16 %v1329, %v1328
        %v1352 = vpack.c.bf16 %v1283, %v1282
        %v1353 = vpack.c.bf16 %v1235, %v1234
        %v1354 = vpack.c.bf16 %v1331, %v1330
        %v1355 = vpack.c.bf16 %v1285, %v1284
        %v1356 = vpack.c.bf16 %v1237, %v1236
        %v1357 = vpack.c.bf16 %v1333, %v1332
        %v1358 = vld [vmem:[#allocation11] sm:$0xf]
        %v1359 = vld [vmem:[#allocation11 + $0x4] sm:$0xf]
        %v1360 = vld [vmem:[#allocation11 + $0x8] sm:$0xf]
        %v1361 = vld [vmem:[#allocation11 + $0xc] sm:$0xf]
        %v1362 = vld [vmem:[#allocation11 + $0x10] sm:$0xf]
        %v1363 = vld [vmem:[#allocation11 + $0x14] sm:$0xf]
        %v1364 = vld [vmem:[#allocation11 + $0x18] sm:$0xf]
        %v1365 = vld [vmem:[#allocation11 + $0x1c] sm:$0xf]
        %v1366 = vld [vmem:[#allocation11 + $0x20] sm:$0xf]
        %v1367 = vld [vmem:[#allocation11 + $0x24] sm:$0xf]
        %v1368 = vld [vmem:[#allocation11 + $0x28] sm:$0xf]
        %v1369 = vld [vmem:[#allocation11 + $0x2c] sm:$0xf]
        %v1370 = vld [vmem:[#allocation11 + $0x30] sm:$0xf]
        %v1371 = vld [vmem:[#allocation11 + $0x34] sm:$0xf]
        %v1372 = vld [vmem:[#allocation11 + $0x38] sm:$0xf]
        %v1373 = vld [vmem:[#allocation11 + $0x3c] sm:$0xf]
        %v1374 = vld [vmem:[#allocation11 + $0x40] sm:$0xf]
        %v1375 = vld [vmem:[#allocation11 + $0x44] sm:$0xf]
        %v1376 = vld [vmem:[#allocation11 + $0x48] sm:$0xf]
        %v1377 = vld [vmem:[#allocation11 + $0x4c] sm:$0xf]
        %v1378 = vld [vmem:[#allocation11 + $0x50] sm:$0xf]
        %v1379 = vld [vmem:[#allocation11 + $0x54] sm:$0xf]
        %v1380 = vld [vmem:[#allocation11 + $0x58] sm:$0xf]
        %v1381 = vld [vmem:[#allocation11 + $0x5c] sm:$0xf]
        %v1382 = vld [vmem:[#allocation11 + $0x60] sm:$0xf]
        %v1383 = vld [vmem:[#allocation11 + $0x64] sm:$0xf]
        %v1384 = vld [vmem:[#allocation11 + $0x68] sm:$0xf]
        %v1385 = vld [vmem:[#allocation11 + $0x6c] sm:$0xf]
        %v1386 = vld [vmem:[#allocation11 + $0x70] sm:$0xf]
        %v1387 = vld [vmem:[#allocation11 + $0x74] sm:$0xf]
        %v1388 = vld [vmem:[#allocation11 + $0x78] sm:$0xf]
        %v1389 = vld [vmem:[#allocation11 + $0x7c] sm:$0xf]
        %v1390 = vld [vmem:[#allocation11 + $0x80] sm:$0xf]
        %v1391 = vld [vmem:[#allocation11 + $0x84] sm:$0xf]
        %v1392 = vld [vmem:[#allocation11 + $0x88] sm:$0xf]
        %v1393 = vld [vmem:[#allocation11 + $0x8c] sm:$0xf]
        %v1394 = vld [vmem:[#allocation11 + $0x90] sm:$0xf]
        %v1395 = vld [vmem:[#allocation11 + $0x94] sm:$0xf]
        %v1396 = vld [vmem:[#allocation11 + $0x98] sm:$0xf]
        %v1397 = vld [vmem:[#allocation11 + $0x9c] sm:$0xf]
        %v1398 = vld [vmem:[#allocation11 + $0xa0] sm:$0xf]
        %v1399 = vld [vmem:[#allocation11 + $0xa4] sm:$0xf]
        %v1400 = vld [vmem:[#allocation11 + $0xa8] sm:$0xf]
        %v1401 = vld [vmem:[#allocation11 + $0xac] sm:$0xf]
        %v1402 = vld [vmem:[#allocation11 + $0xb0] sm:$0xf]
        %v1403 = vld [vmem:[#allocation11 + $0xb4] sm:$0xf]
        %v1404 = vld [vmem:[#allocation11 + $0xb8] sm:$0xf]
        %v1405 = vld [vmem:[#allocation11 + $0xbc] sm:$0xf]
        %v1454 = vunpack.c.l.b16 %v1358
        %v1455 = vunpack.c.l.b16 %v1359
        %v1456 = vunpack.c.l.b16 %v1360
        %v1457 = vunpack.c.l.b16 %v1361
        %v1458 = vunpack.c.l.b16 %v1362
        %v1459 = vunpack.c.l.b16 %v1363
        %v1460 = vunpack.c.l.b16 %v1364
        %v1461 = vunpack.c.l.b16 %v1365
        %v1462 = vunpack.c.l.b16 %v1366
        %v1463 = vunpack.c.l.b16 %v1367
        %v1464 = vunpack.c.l.b16 %v1368
        %v1465 = vunpack.c.l.b16 %v1369
        %v1466 = vunpack.c.l.b16 %v1370
        %v1467 = vunpack.c.l.b16 %v1371
        %v1468 = vunpack.c.l.b16 %v1372
        %v1469 = vunpack.c.l.b16 %v1373
        %v1470 = vunpack.c.l.b16 %v1374
        %v1471 = vunpack.c.l.b16 %v1375
        %v1472 = vunpack.c.l.b16 %v1376
        %v1473 = vunpack.c.l.b16 %v1377
        %v1474 = vunpack.c.l.b16 %v1378
        %v1475 = vunpack.c.l.b16 %v1379
        %v1476 = vunpack.c.l.b16 %v1380
        %v1477 = vunpack.c.l.b16 %v1381
        %v1478 = vunpack.c.l.b16 %v1382
        %v1479 = vunpack.c.l.b16 %v1383
        %v1480 = vunpack.c.l.b16 %v1384
        %v1481 = vunpack.c.l.b16 %v1385
        %v1482 = vunpack.c.l.b16 %v1386
        %v1483 = vunpack.c.l.b16 %v1387
        %v1484 = vunpack.c.l.b16 %v1388
        %v1485 = vunpack.c.l.b16 %v1389
        %v1486 = vunpack.c.l.b16 %v1390
        %v1487 = vunpack.c.l.b16 %v1391
        %v1488 = vunpack.c.l.b16 %v1392
        %v1489 = vunpack.c.l.b16 %v1393
        %v1490 = vunpack.c.l.b16 %v1394
        %v1491 = vunpack.c.l.b16 %v1395
        %v1492 = vunpack.c.l.b16 %v1396
        %v1493 = vunpack.c.l.b16 %v1397
        %v1494 = vunpack.c.l.b16 %v1398
        %v1495 = vunpack.c.l.b16 %v1399
        %v1496 = vunpack.c.l.b16 %v1400
        %v1497 = vunpack.c.l.b16 %v1401
        %v1498 = vunpack.c.l.b16 %v1402
        %v1499 = vunpack.c.l.b16 %v1403
        %v1500 = vunpack.c.l.b16 %v1404
        %v1501 = vunpack.c.l.b16 %v1405
        %v1502 = vpack.c.b16 %v1455, %v1454
        %v1503 = vpack.c.b16 %v1457, %v1456
        %v1504 = vpack.c.b16 %v1459, %v1458
        %v1505 = vpack.c.b16 %v1461, %v1460
        %v1506 = vpack.c.b16 %v1463, %v1462
        %v1507 = vpack.c.b16 %v1465, %v1464
        %v1508 = vpack.c.b16 %v1467, %v1466
        %v1509 = vpack.c.b16 %v1469, %v1468
        %v1510 = vpack.c.b16 %v1471, %v1470
        %v1511 = vpack.c.b16 %v1473, %v1472
        %v1512 = vpack.c.b16 %v1475, %v1474
        %v1513 = vpack.c.b16 %v1477, %v1476
        %v1514 = vpack.c.b16 %v1479, %v1478
        %v1515 = vpack.c.b16 %v1481, %v1480
        %v1516 = vpack.c.b16 %v1483, %v1482
        %v1517 = vpack.c.b16 %v1485, %v1484
        %v1518 = vpack.c.b16 %v1487, %v1486
        %v1519 = vpack.c.b16 %v1489, %v1488
        %v1520 = vpack.c.b16 %v1491, %v1490
        %v1521 = vpack.c.b16 %v1493, %v1492
        %v1522 = vpack.c.b16 %v1495, %v1494
        %v1523 = vpack.c.b16 %v1497, %v1496
        %v1524 = vpack.c.b16 %v1499, %v1498
        %v1525 = vpack.c.b16 %v1501, %v1500
        %1550 = vmatprep.subr.bf16.mxu0 0
        %1551 = vmatpush1.bf16.msra.mxu0 %v1502
        %1552 = vmatprep.subr.bf16.mxu0 0
        %1553 = vmatpush1.bf16.msra.mxu0 %v1503
        %1554 = vmatprep.subr.bf16.mxu0 0
        %1555 = vmatpush1.bf16.msra.mxu0 %v1504
        %1556 = vmatprep.subr.bf16.mxu0 0
        %1557 = vmatpush1.bf16.msra.mxu0 %v1505
        %1558 = vmatprep.subr.bf16.mxu0 0
        %1559 = vmatpush1.bf16.msra.mxu0 %v1506
        %1560 = vmatprep.subr.bf16.mxu0 0
        %1561 = vmatpush1.bf16.msra.mxu0 %v1507
        %1562 = vmatprep.subr.bf16.mxu0 0
        %1563 = vmatpush1.bf16.msra.mxu0 %v1508
        %1564 = vmatprep.subr.bf16.mxu0 0
        %1565 = vmatpush1.bf16.msra.mxu0 %v1509
        %1566 = vmatprep.subr.bf16.mxu0 0
        %1567 = vmatpush1.bf16.msra.mxu0 %v1510
        %1568 = vmatprep.subr.bf16.mxu0 0
        %1569 = vmatpush1.bf16.msra.mxu0 %v1511
        %1570 = vmatprep.subr.bf16.mxu0 0
        %1571 = vmatpush1.bf16.msra.mxu0 %v1512
        %1572 = vmatprep.subr.bf16.mxu0 0
        %1573 = vmatpush1.bf16.msra.mxu0 %v1513
        %1574 = vmatprep.subr.bf16.mxu0 0
        %1575 = vmatpush1.bf16.msra.mxu0 %v1514
        %1576 = vmatprep.subr.bf16.mxu0 0
        %1577 = vmatpush1.bf16.msra.mxu0 %v1515
        %1578 = vmatprep.subr.bf16.mxu0 0
        %1579 = vmatpush1.bf16.msra.mxu0 %v1516
        %1580 = vmatprep.subr.bf16.mxu0 0
        %1581 = vmatpush1.bf16.msra.mxu0 %v1517
        %1582 = vmatprep.mubr.bf16.mxu0 %v1335
        %1583 = vmatmul.mubr.bf16.gmra.mrb[0].mxu0 %v1334
        %v1584 = vpop.f32.mrb[0].mxu0
        %v1585 = vadd.f32 0.0, %v1584
        %v1586 = vpop.f32.mrb[0].mxu0
        %v1587 = vpop.f32.mrb[0].mxu0
        %v1588 = vadd.f32 0.0, %v1587
        %v1589 = vpop.f32.mrb[0].mxu0
        %1590 = vmatprep.mubr.bf16.mxu0 %v1338
        %1591 = vmatmul.mubr.bf16.gmra.mrb[0].mxu0 %v1337
        %v1592 = vpop.f32.mrb[0].mxu0
        %v1593 = vadd.f32 0.0, %v1592
        %v1594 = vpop.f32.mrb[0].mxu0
        %v1595 = vpop.f32.mrb[0].mxu0
        %v1596 = vadd.f32 0.0, %v1595
        %v1597 = vpop.f32.mrb[0].mxu0
        %1598 = vmatprep.mubr.bf16.mxu0 %v1341
        %1599 = vmatmul.mubr.bf16.gmra.mrb[0].mxu0 %v1340
        %v1600 = vpop.f32.mrb[0].mxu0
        %v1601 = vadd.f32 0.0, %v1600
        %v1602 = vpop.f32.mrb[0].mxu0
        %v1603 = vpop.f32.mrb[0].mxu0
        %v1604 = vadd.f32 0.0, %v1603
        %v1605 = vpop.f32.mrb[0].mxu0
        %1606 = vmatprep.mubr.bf16.mxu0 %v1344
        %1607 = vmatmul.mubr.bf16.gmra.mrb[0].mxu0 %v1343
        %v1608 = vpop.f32.mrb[0].mxu0
        %v1609 = vadd.f32 0.0, %v1608
        %v1610 = vpop.f32.mrb[0].mxu0
        %v1611 = vpop.f32.mrb[0].mxu0
        %v1612 = vadd.f32 0.0, %v1611
        %v1613 = vpop.f32.mrb[0].mxu0
        %1614 = vmatprep.mubr.bf16.mxu0 %v1347
        %1615 = vmatmul.mubr.bf16.gmra.mrb[0].mxu0 %v1346
        %v1616 = vpop.f32.mrb[0].mxu0
        %v1617 = vadd.f32 0.0, %v1616
        %v1618 = vpop.f32.mrb[0].mxu0
        %v1619 = vpop.f32.mrb[0].mxu0
        %v1620 = vadd.f32 0.0, %v1619
        %v1621 = vpop.f32.mrb[0].mxu0
        %1622 = vmatprep.mubr.bf16.mxu0 %v1350
        %1623 = vmatmul.mubr.bf16.gmra.mrb[0].mxu0 %v1349
        %v1624 = vpop.f32.mrb[0].mxu0
        %v1625 = vadd.f32 0.0, %v1624
        %v1626 = vpop.f32.mrb[0].mxu0
        %v1627 = vpop.f32.mrb[0].mxu0
        %v1628 = vadd.f32 0.0, %v1627
        %v1629 = vpop.f32.mrb[0].mxu0
        %1630 = vmatprep.mubr.bf16.mxu0 %v1353
        %1631 = vmatmul.mubr.bf16.gmra.mrb[0].mxu0 %v1352
        %v1632 = vpop.f32.mrb[0].mxu0
        %v1633 = vadd.f32 0.0, %v1632
        %v1634 = vpop.f32.mrb[0].mxu0
        %v1635 = vpop.f32.mrb[0].mxu0
        %v1636 = vadd.f32 0.0, %v1635
        %v1637 = vpop.f32.mrb[0].mxu0
        %1638 = vmatprep.mubr.bf16.mxu0 %v1356
        %1639 = vmatmul.mubr.bf16.gmra.mrb[0].mxu0 %v1355
        %v1640 = vpop.f32.mrb[0].mxu0
        %v1641 = vadd.f32 0.0, %v1640
        %v1642 = vpop.f32.mrb[0].mxu0
        %v1643 = vpop.f32.mrb[0].mxu0
        %v1644 = vadd.f32 0.0, %v1643
        %v1645 = vpop.f32.mrb[0].mxu0
        %1646 = vdwg.mxu0
        %1647 = vmatprep.subr.bf16.mxu0 0
        %1648 = vmatpush1.bf16.msra.mxu0 %v1518
        %1649 = vmatprep.subr.bf16.mxu0 0
        %1650 = vmatpush1.bf16.msra.mxu0 %v1519
        %1651 = vmatprep.subr.bf16.mxu0 0
        %1652 = vmatpush1.bf16.msra.mxu0 %v1520
        %1653 = vmatprep.subr.bf16.mxu0 0
        %1654 = vmatpush1.bf16.msra.mxu0 %v1521
        %1655 = vmatprep.subr.bf16.mxu0 0
        %1656 = vmatpush1.bf16.msra.mxu0 %v1522
        %1657 = vmatprep.subr.bf16.mxu0 0
        %1658 = vmatpush1.bf16.msra.mxu0 %v1523
        %1659 = vmatprep.subr.bf16.mxu0 0
        %1660 = vmatpush1.bf16.msra.mxu0 %v1524
        %1661 = vmatprep.subr.bf16.mxu0 0
        %1662 = vmatpush1.bf16.msra.mxu0 %v1525
        %1663 = vmatprep.subr.bf16.mxu0 0
        %1664 = vmatpush1.bf16.msra.mxu0 0
        %1665 = vmatprep.subr.bf16.mxu0 0
        %1666 = vmatpush1.bf16.msra.mxu0 0
        %1667 = vmatprep.subr.bf16.mxu0 0
        %1668 = vmatpush1.bf16.msra.mxu0 0
        %1669 = vmatprep.subr.bf16.mxu0 0
        %1670 = vmatpush1.bf16.msra.mxu0 0
        %1671 = vmatprep.subr.bf16.mxu0 0
        %1672 = vmatpush1.bf16.msra.mxu0 0
        %1673 = vmatprep.subr.bf16.mxu0 0
        %1674 = vmatpush1.bf16.msra.mxu0 0
        %1675 = vmatprep.subr.bf16.mxu0 0
        %1676 = vmatpush1.bf16.msra.mxu0 0
        %1677 = vmatprep.subr.bf16.mxu0 0
        %1678 = vmatpush1.bf16.msra.mxu0 0
        %1679 = vmatprep.mubr.bf16.mxu0 0
        %1680 = vmatmul.mubr.bf16.gmra.mrb[0].mxu0 %v1336
        %v1681 = vpop.f32.mrb[0].mxu0
        %v1682 = vadd.f32 %v1585, %v1681
        %v1683 = vpop.f32.mrb[0].mxu0
        %v1684 = vpop.f32.mrb[0].mxu0
        %v1685 = vadd.f32 %v1588, %v1684
        %v1686 = vpop.f32.mrb[0].mxu0
        %1687 = vmatprep.mubr.bf16.mxu0 0
        %1688 = vmatmul.mubr.bf16.gmra.mrb[0].mxu0 %v1339
        %v1689 = vpop.f32.mrb[0].mxu0
        %v1690 = vadd.f32 %v1593, %v1689
        %v1691 = vpop.f32.mrb[0].mxu0
        %v1692 = vpop.f32.mrb[0].mxu0
        %v1693 = vadd.f32 %v1596, %v1692
        %v1694 = vpop.f32.mrb[0].mxu0
        %1695 = vmatprep.mubr.bf16.mxu0 0
        %1696 = vmatmul.mubr.bf16.gmra.mrb[0].mxu0 %v1342
        %v1697 = vpop.f32.mrb[0].mxu0
        %v1698 = vadd.f32 %v1601, %v1697
        %v1699 = vpop.f32.mrb[0].mxu0
        %v1700 = vpop.f32.mrb[0].mxu0
        %v1701 = vadd.f32 %v1604, %v1700
        %v1702 = vpop.f32.mrb[0].mxu0
        %1703 = vmatprep.mubr.bf16.mxu0 0
        %1704 = vmatmul.mubr.bf16.gmra.mrb[0].mxu0 %v1345
        %v1705 = vpop.f32.mrb[0].mxu0
        %v1706 = vadd.f32 %v1609, %v1705
        %v1707 = vpop.f32.mrb[0].mxu0
        %v1708 = vpop.f32.mrb[0].mxu0
        %v1709 = vadd.f32 %v1612, %v1708
        %v1710 = vpop.f32.mrb[0].mxu0
        %1711 = vmatprep.mubr.bf16.mxu0 0
        %1712 = vmatmul.mubr.bf16.gmra.mrb[0].mxu0 %v1348
        %v1713 = vpop.f32.mrb[0].mxu0
        %v1714 = vadd.f32 %v1617, %v1713
        %v1715 = vpop.f32.mrb[0].mxu0
        %v1716 = vpop.f32.mrb[0].mxu0
        %v1717 = vadd.f32 %v1620, %v1716
        %v1718 = vpop.f32.mrb[0].mxu0
        %1719 = vmatprep.mubr.bf16.mxu0 0
        %1720 = vmatmul.mubr.bf16.gmra.mrb[0].mxu0 %v1351
        %v1721 = vpop.f32.mrb[0].mxu0
        %v1722 = vadd.f32 %v1625, %v1721
        %v1723 = vpop.f32.mrb[0].mxu0
        %v1724 = vpop.f32.mrb[0].mxu0
        %v1725 = vadd.f32 %v1628, %v1724
        %v1726 = vpop.f32.mrb[0].mxu0
        %1727 = vmatprep.mubr.bf16.mxu0 0
        %1728 = vmatmul.mubr.bf16.gmra.mrb[0].mxu0 %v1354
        %v1729 = vpop.f32.mrb[0].mxu0
        %v1730 = vadd.f32 %v1633, %v1729
        %v1731 = vpop.f32.mrb[0].mxu0
        %v1732 = vpop.f32.mrb[0].mxu0
        %v1733 = vadd.f32 %v1636, %v1732
        %v1734 = vpop.f32.mrb[0].mxu0
        %1735 = vmatprep.mubr.bf16.mxu0 0
        %1736 = vmatmul.mubr.bf16.gmra.mrb[0].mxu0 %v1357
        %v1737 = vpop.f32.mrb[0].mxu0
        %v1738 = vadd.f32 %v1641, %v1737
        %v1739 = vpop.f32.mrb[0].mxu0
        %v1740 = vpop.f32.mrb[0].mxu0
        %v1741 = vadd.f32 %v1644, %v1740
        %v1742 = vpop.f32.mrb[0].mxu0
        %1743 = vdwg.mxu0
        %v1744 = vadd.f32 %v1123, %v1682
        %v1745 = vadd.f32 %v1127, %v1685
        %v1746 = vadd.f32 %v1133, %v1690
        %v1747 = vadd.f32 %v1137, %v1693
        %v1748 = vadd.f32 %v1143, %v1698
        %v1749 = vadd.f32 %v1147, %v1701
        %v1750 = vadd.f32 %v1153, %v1706
        %v1751 = vadd.f32 %v1157, %v1709
        %v1752 = vadd.f32 %v1163, %v1714
        %v1753 = vadd.f32 %v1167, %v1717
        %v1754 = vadd.f32 %v1173, %v1722
        %v1755 = vadd.f32 %v1177, %v1725
        %v1756 = vadd.f32 %v1183, %v1730
        %v1757 = vadd.f32 %v1187, %v1733
        %v1758 = vadd.f32 %v1193, %v1738
        %v1759 = vadd.f32 %v1197, %v1741
        %v1760 = vpack.c.bf16 %v1745, %v1744
        %v1761 = vpack.c.bf16 %v1747, %v1746
        %v1762 = vpack.c.bf16 %v1749, %v1748
        %v1763 = vpack.c.bf16 %v1751, %v1750
        %v1764 = vpack.c.bf16 %v1753, %v1752
        %v1765 = vpack.c.bf16 %v1755, %v1754
        %v1766 = vpack.c.bf16 %v1757, %v1756
        %v1767 = vpack.c.bf16 %v1759, %v1758
        %v1776 = vunpack.c.l.b16 %v1760
        %v1777 = vunpack.c.h.b16 %v1760
        %v1778 = vunpack.c.l.b16 %v1761
        %v1779 = vunpack.c.h.b16 %v1761
        %v1780 = vunpack.c.l.b16 %v1762
        %v1781 = vunpack.c.h.b16 %v1762
        %v1782 = vunpack.c.l.b16 %v1763
        %v1783 = vunpack.c.h.b16 %v1763
        %v1784 = vunpack.c.l.b16 %v1764
        %v1785 = vunpack.c.h.b16 %v1764
        %v1786 = vunpack.c.l.b16 %v1765
        %v1787 = vunpack.c.h.b16 %v1765
        %v1788 = vunpack.c.l.b16 %v1766
        %v1789 = vunpack.c.h.b16 %v1766
        %v1790 = vunpack.c.l.b16 %v1767
        %v1791 = vunpack.c.h.b16 %v1767
        %v1792 = vpack.c.b16 %v1776, %v1776
        %v1793 = vpack.c.b16 %v1777, %v1777
        %v1794 = vpack.c.b16 %v1778, %v1778
        %v1795 = vpack.c.b16 %v1779, %v1779
        %v1796 = vpack.c.b16 %v1780, %v1780
        %v1797 = vpack.c.b16 %v1781, %v1781
        %v1798 = vpack.c.b16 %v1782, %v1782
        %v1799 = vpack.c.b16 %v1783, %v1783
        %v1800 = vpack.c.b16 %v1784, %v1784
        %v1801 = vpack.c.b16 %v1785, %v1785
        %v1802 = vpack.c.b16 %v1786, %v1786
        %v1803 = vpack.c.b16 %v1787, %v1787
        %v1804 = vpack.c.b16 %v1788, %v1788
        %v1805 = vpack.c.b16 %v1789, %v1789
        %v1806 = vpack.c.b16 %v1790, %v1790
        %v1807 = vpack.c.b16 %v1791, %v1791
        %1824 = vst [vmem:[%s336] sm:$0xf] %v1792
        %1825 = vst [vmem:[%s336 + $0x4] sm:$0xf] %v1793
        %1826 = vst [vmem:[%s336 + $0x8] sm:$0xf] %v1794
        %1827 = vst [vmem:[%s336 + $0xc] sm:$0xf] %v1795
        %1828 = vst [vmem:[%s336 + $0x10] sm:$0xf] %v1796
        %1829 = vst [vmem:[%s336 + $0x14] sm:$0xf] %v1797
        %1830 = vst [vmem:[%s336 + $0x18] sm:$0xf] %v1798
        %1831 = vst [vmem:[%s336 + $0x1c] sm:$0xf] %v1799
        %1832 = vst [vmem:[%s336 + $0x20] sm:$0xf] %v1800
        %1833 = vst [vmem:[%s336 + $0x24] sm:$0xf] %v1801
        %1834 = vst [vmem:[%s336 + $0x28] sm:$0xf] %v1802
        %1835 = vst [vmem:[%s336 + $0x2c] sm:$0xf] %v1803
        %1836 = vst [vmem:[%s336 + $0x30] sm:$0xf] %v1804
        %1837 = vst [vmem:[%s336 + $0x34] sm:$0xf] %v1805
        %1838 = vst [vmem:[%s336 + $0x38] sm:$0xf] %v1806
        %1839 = vst [vmem:[%s336 + $0x3c] sm:$0xf] %v1807
        %s1840 = sand.u32 %s165, 1
        %s1841 = scalar_lea.sflag [#allocation4], %s1840
        %s1842 = sand.u32 %s165, 1
        %s1843 = smul.addr %s1842, 64
        %s1844 = scalar_lea.vmem [#allocation13], %s1843
        // Predicated region
        $region69: #{preact_block_forward.1} parent=43 // pred_check
          %p1845 = pneg %p175
        $region70: #{preact_block_forward.1} parent=43 // pred_check_branch
          %1847 = sbr.rel (%p1845) target = $region72
        $region71: #{preact_block_forward.1} parent=43 // pred_region
          %s1848 = smul.u32 16, %s26
          %s1850 = ssub.s32 1024, 1024
          %1851 = vsyncadd %s1841, %s1850
          %s1852 = smul.addr %s1848, 64
          %s1853 = scalar_lea.hbm %s6, %s1852
          %s1854 = sshll.u32 %s1844, 4
          %s1855 = int_to_ptr.vmem [resolvable:$true] %s1854
          %1860 = dma.vmem_to_hbm [thread:$0]  %s1855, 1024, %s1853, %s1841, 64, 64, 4
        $region72: #{preact_block_forward.1} parent=43 // pred_fallthru
          _
      $region44: #{preact_block_forward.1} parent=5 // pred_fallthru
        _
      %p1861 = scmp.le.s32.totalorder 2, %s21
      // Predicated region
      $region73: #{preact_block_forward.1} parent=5 // pred_check
        %p1862 = pneg %p1861
      $region74: #{preact_block_forward.1} parent=5 // pred_check_branch
        %1864 = sbr.rel (%p1862) target = $region76
      $region75: #{preact_block_forward.1} parent=5 // pred_region
        %s1865 = ssub.s32 %s21, 2
        // Predicated region
        $region77: #{preact_block_forward.1} parent=75 // pred_check
          %p1866 = pneg %p181
        $region78: #{preact_block_forward.1} parent=75 // pred_check_branch
          %1868 = sbr.rel (%p1866) target = $region80
        $region79: #{preact_block_forward.1} parent=75 // pred_region
          %s1869 = sand.u32 %s166, 1
          %s1870 = scalar_lea.sflag [#allocation4], %s1869
          %s1871 = sand.u32 %s166, 1
          %s1872 = smul.addr %s1871, 64
          %s1873 = scalar_lea.vmem [#allocation13], %s1872
          %1874 = dma.done %s1870, 1024
        $region80: #{preact_block_forward.1} parent=75 // pred_fallthru
          _
      $region76: #{preact_block_forward.1} parent=5 // pred_fallthru
        _
    $region6: #{preact_block_forward.1} parent=1 // loop_footer
      %s25 = sadd.s32 1, %s21
    $region7: #{preact_block_forward.1} parent=1 // loop_footer_branch
      %20 = sbr.rel target = $region3
    $region8: #{preact_block_forward.1} parent=1 // loop_exit
      _
    %1875 = vsyncpa [#allocation3], 1
    %s1876 = scalar_lea.sflag [#allocation3], 1
    %1877 = vsyncpa %s1876, 1
    %1878 = vsyncpa [#allocation6], 1
    %1879 = vsyncpa [#allocation9], 1
    %1880 = vsyncpa [#allocation12], 1
    %1881 = vsyncpa [#allocation4], 1
    %s1882 = scalar_lea.sflag [#allocation4], 1
    %1883 = vsyncpa %s1882, 1

</llo_original>
